<compile_context>
chip_gen: v5e
topology: v5e:2x2
jax: 0.10.0
libtpu: 0.0.40
codegen_flags: <defaults>
</compile_context>

<pallas_src>
import functools

import jax
import jax.numpy as jnp
from jax.experimental import pallas as pl
from jax.experimental.pallas import tpu as pltpu

_LANE = 128


def actor_kernel(obs_ref, w1_ref, b1_ref, w2_ref, b2_ref,
                 whead_ref, bhead_ref, w3rf_ref,
                 logits_ref, mu_ref, *, nbins_p):
    bf16, f32 = jnp.bfloat16, jnp.float32

    # policy MLP: bf16 MXU operands, f32 accumulation, f32 elementwise (ReLU).
    h = jnp.dot(obs_ref[...], w1_ref[...], preferred_element_type=f32) + b1_ref[...]
    h = jnp.maximum(h, 0.0)
    h = jnp.dot(h.astype(bf16), w2_ref[...], preferred_element_type=f32) + b2_ref[...]
    h = jnp.maximum(h, 0.0)
    h16 = h.astype(bf16)  # single cast, single fused head matmul below

    # fused head: [bin logits | offset-head backbone term], 256 output lanes.
    head = jnp.dot(h16, whead_ref[...], preferred_element_type=f32) + bhead_ref[...]
    logits = head[:, :nbins_p]        # lane-aligned split at 128
    pre_mu = head[:, nbins_p:]
    logits_ref[...] = logits          # lane-dense (tile_b, 128) store

    # argmax over bins with first-occurrence tie-break (matches torch.argmax),
    # expressed as a one-hot so the "gather" is an MXU matmul against the
    # offline-folded (cluster_centers @ W3r) matrix.
    npad = logits.shape[-1]
    maxv = jnp.max(logits, axis=-1, keepdims=True)
    col = jax.lax.broadcasted_iota(jnp.int32, logits.shape, 1)
    idx = jnp.min(jnp.where(logits == maxv, col, npad), axis=-1, keepdims=True)
    onehot = (col == idx).astype(bf16)

    mu = jnp.tanh(pre_mu + jnp.dot(onehot, w3rf_ref[...],
                                   preferred_element_type=f32))
    mu_ref[...] = mu                  # lane-dense (tile_b, 128) store


def _pick_batch_tile(B):
    """Largest multiple-of-8 divisor of B, capped at 256 (argmax working set),
    preferring >=2 grid steps so ("parallel",) can shard across v7x's 2 TCs."""
    divisors = [t for t in (256, 128, 64, 32, 16, 8) if B % t == 0]
    for t in divisors:
        if B // t >= 2:
            return t
    if divisors:
        return divisors[0]
    return B  # odd batch: full-array block (legal; masked sublane stores)


def prepare_actor_params(params, cluster_centers):
    """One-time pad/cast/fuse of parameters (kept out of the per-call path)."""
    f32, bf16 = jnp.float32, jnp.bfloat16
    repr_dim, hidden_dim = params["w1"].shape
    nbins = params["wb"].shape[1]
    act_dim = params["w3h"].shape[1]
    nbins_p = pl.cdiv(nbins, _LANE) * _LANE
    act_p = pl.cdiv(act_dim, _LANE) * _LANE

    w1 = params["w1"].astype(bf16)
    w2 = params["w2"].astype(bf16)
    b1 = params["b1"].reshape(1, hidden_dim).astype(f32)
    b2 = params["b2"].reshape(1, hidden_dim).astype(f32)

    # fused head weight [wb | w3h], each half lane-padded to 128.
    whead = jnp.zeros((hidden_dim, nbins_p + act_p), bf16)
    whead = whead.at[:, :nbins].set(params["wb"].astype(bf16))
    whead = whead.at[:, nbins_p:nbins_p + act_dim].set(params["w3h"].astype(bf16))

    # fused bias [bb | b3]; padded logit columns get -1e30 so argmax never
    # selects a padding column.
    bhead = jnp.concatenate([
        jnp.full((1, nbins_p), -1e30, f32).at[:, :nbins].set(
            params["bb"].reshape(1, nbins).astype(f32)),
        jnp.zeros((1, act_p), f32).at[:, :act_dim].set(
            params["b3"].reshape(1, act_dim).astype(f32)),
    ], axis=1)

    # fold cluster centers into the offset head: W3r' = cc @ W3r (f32 -> bf16).
    w3rf = jnp.zeros((nbins_p, act_p), f32).at[:nbins, :act_dim].set(
        jnp.dot(cluster_centers.astype(f32), params["w3r"].astype(f32)))
    w3rf = w3rf.astype(bf16)

    return {"w1": w1, "b1": b1, "w2": w2, "b2": b2,
            "whead": whead, "bhead": bhead, "w3rf": w3rf}


@functools.partial(jax.jit, static_argnames=("nbins", "act_dim"))
def actor_forward(obs, prepped, std, *, nbins, act_dim):
    """Returns (bin_logits, mu, std_out) with the same semantics as Actor.forward."""
    f32, bf16 = jnp.float32, jnp.bfloat16
    B, repr_dim = obs.shape
    hidden_dim = prepped["w1"].shape[1]
    nbins_p, act_p = prepped["w3rf"].shape
    head_p = nbins_p + act_p

    tile_b = _pick_batch_tile(B)
    grid = (B // tile_b,)
    const2 = lambda i: (0, 0)
    batch2 = lambda i: (i, 0)

    kernel = functools.partial(actor_kernel, nbins_p=nbins_p)

    logits_p, mu_p = pl.pallas_call(
        kernel,
        out_shape=(
            jax.ShapeDtypeStruct((B, nbins_p), f32),
            jax.ShapeDtypeStruct((B, act_p), f32),
        ),
        grid=grid,
        in_specs=[
            pl.BlockSpec((tile_b, repr_dim), batch2),           # obs (tiled, bf16)
            pl.BlockSpec((repr_dim, hidden_dim), const2),       # w1
            pl.BlockSpec((1, hidden_dim), const2),              # b1
            pl.BlockSpec((hidden_dim, hidden_dim), const2),     # w2
            pl.BlockSpec((1, hidden_dim), const2),              # b2
            pl.BlockSpec((hidden_dim, head_p), const2),         # fused [wb | w3h]
            pl.BlockSpec((1, head_p), const2),                  # fused [bb | b3]
            pl.BlockSpec((nbins_p, act_p), const2),             # folded cc @ w3r
        ],
        out_specs=(
            pl.BlockSpec((tile_b, nbins_p), batch2),
            pl.BlockSpec((tile_b, act_p), batch2),
        ),
        compiler_params=pltpu.CompilerParams(
            dimension_semantics=("parallel",)),   # batch axis shards across v7x TCs
    )(obs.astype(bf16), prepped["w1"], prepped["b1"], prepped["w2"], prepped["b2"],
      prepped["whead"], prepped["bhead"], prepped["w3rf"])

    # slices live inside this jit, so they fuse instead of re-reading HBM.
    bin_logits = logits_p[:, :nbins]
    mu = mu_p[:, :act_dim]
    std_out = jnp.full((B, act_dim), std, f32)   # data-independent, outside kernel
    return bin_logits, mu, std_out


def init_params(key, repr_dim, hidden_dim, nbins, action_dim):
    """Deterministic synthetic init (stands in for utils.weight_init)."""
    ks = jax.random.split(key, 5)
    scale = 0.1
    w3_full = scale * jax.random.normal(
        ks[3], (hidden_dim + repr_dim, action_dim), jnp.float32)
    return {
        "w1": scale * jax.random.normal(ks[0], (repr_dim, hidden_dim), jnp.float32),
        "b1": jnp.zeros((1, hidden_dim), jnp.float32),
        "w2": scale * jax.random.normal(ks[1], (hidden_dim, hidden_dim), jnp.float32),
        "b2": jnp.zeros((1, hidden_dim), jnp.float32),
        "wb": scale * jax.random.normal(ks[2], (hidden_dim, nbins), jnp.float32),
        "bb": jnp.zeros((1, nbins), jnp.float32),
        # offset head weight split into the backbone part and the bin_pred part
        "w3h": w3_full[:hidden_dim, :],
        "w3r": w3_full[hidden_dim:, :],
        "b3": jnp.zeros((1, action_dim), jnp.float32),
    }


def ref_forward(obs, params, cluster_centers, std):
    """Pure-JAX reference using the same bf16-operand / f32-accumulation math
    (including the offline cluster_centers @ W3r fold and its bf16 rounding)."""
    bf16, f32 = jnp.bfloat16, jnp.float32

    def mm(x, w):
        return jnp.dot(x.astype(bf16), w.astype(bf16), preferred_element_type=f32)

    h = jnp.maximum(mm(obs, params["w1"]) + params["b1"], 0.0)
    h = jnp.maximum(mm(h, params["w2"]) + params["b2"], 0.0)
    logits = mm(h, params["wb"]) + params["bb"]
    idx = jnp.argmax(jax.nn.softmax(logits, axis=-1), axis=-1)
    w3rf = jnp.dot(cluster_centers.astype(f32),
                   params["w3r"].astype(f32)).astype(bf16).astype(f32)
    mu = jnp.tanh(mm(h, params["w3h"]) + w3rf[idx] + params["b3"])
    std_out = jnp.full((obs.shape[0], mu.shape[1]), std, f32)
    return logits, mu, std_out


if __name__ == "__main__":
    B, repr_dim, hidden_dim, nbins, action_dim = 512, 32, 32, 16, 4
    std = 0.2

    key = jax.random.PRNGKey(0)
    k_obs, k_cc, k_par = jax.random.split(key, 3)

    obs = jax.random.normal(k_obs, (B, repr_dim), jnp.float32)
    cluster_centers = jax.random.normal(k_cc, (nbins, repr_dim), jnp.float32)
    params = init_params(k_par, repr_dim, hidden_dim, nbins, action_dim)

    prepped = prepare_actor_params(params, cluster_centers)   # pad/cast/fuse ONCE

    bin_logits, mu, std_out = actor_forward(
        obs, prepped, jnp.float32(std), nbins=nbins, act_dim=action_dim)
    jax.block_until_ready((bin_logits, mu, std_out))

    # sanity check against a pure-JAX reference (same bf16/f32 numerics)
    logits_ref, mu_ref, std_ref = ref_forward(obs, params, cluster_centers, std)
    assert bin_logits.shape == (B, nbins) and mu.shape == (B, action_dim)
    assert jnp.allclose(bin_logits, logits_ref, atol=1e-3), "bin_logits mismatch"
    assert jnp.allclose(mu, mu_ref, atol=1e-3), "mu mismatch"
    assert jnp.allclose(std_out, std_ref, atol=1e-6), "std mismatch"

    print("KERNEL_OK")
</pallas_src>

<mosaic_0001>
module attributes {stable_mosaic.version = 11 : i64} {
  func.func @actor_kernel(%arg0: i32, %arg1: memref<256x32xbf16, #tpu.memory_space<vmem>>, %arg2: memref<32x32xbf16, #tpu.memory_space<vmem>>, %arg3: memref<1x32xf32, #tpu.memory_space<vmem>>, %arg4: memref<32x32xbf16, #tpu.memory_space<vmem>>, %arg5: memref<1x32xf32, #tpu.memory_space<vmem>>, %arg6: memref<32x256xbf16, #tpu.memory_space<vmem>>, %arg7: memref<1x256xf32, #tpu.memory_space<vmem>>, %arg8: memref<128x128xbf16, #tpu.memory_space<vmem>>, %arg9: memref<256x128xf32, #tpu.memory_space<vmem>>, %arg10: memref<256x128xf32, #tpu.memory_space<vmem>>) attributes {dimension_semantics = [#tpu.dimension_semantics<parallel>], iteration_bounds = array<i64: 2>, scalar_prefetch = 0 : i64, scratch_operands = 0 : i64, tpu.core_type = #tpu.core_type<tc>, window_params = [{transform_indices = @transform_0, window_bounds = array<i64: 256, 32>}, {pipeline_mode = #tpu.pipeline_mode<synchronous>, transform_indices = @transform_1, window_bounds = array<i64: 32, 32>}, {pipeline_mode = #tpu.pipeline_mode<synchronous>, transform_indices = @transform_2, window_bounds = array<i64: 1, 32>}, {pipeline_mode = #tpu.pipeline_mode<synchronous>, transform_indices = @transform_3, window_bounds = array<i64: 32, 32>}, {pipeline_mode = #tpu.pipeline_mode<synchronous>, transform_indices = @transform_4, window_bounds = array<i64: 1, 32>}, {pipeline_mode = #tpu.pipeline_mode<synchronous>, transform_indices = @transform_5, window_bounds = array<i64: 32, 256>}, {pipeline_mode = #tpu.pipeline_mode<synchronous>, transform_indices = @transform_6, window_bounds = array<i64: 1, 256>}, {pipeline_mode = #tpu.pipeline_mode<synchronous>, transform_indices = @transform_7, window_bounds = array<i64: 128, 128>}, {transform_indices = @transform_8, window_bounds = array<i64: 256, 128>}, {transform_indices = @transform_9, window_bounds = array<i64: 256, 128>}]} {
    %c0 = arith.constant 0 : index
    %c0_0 = arith.constant 0 : index
    %0 = vector.load %arg1[%c0, %c0_0] : memref<256x32xbf16, #tpu.memory_space<vmem>>, vector<256x32xbf16>
    %c0_1 = arith.constant 0 : index
    %c0_2 = arith.constant 0 : index
    %1 = vector.load %arg2[%c0_1, %c0_2] : memref<32x32xbf16, #tpu.memory_space<vmem>>, vector<32x32xbf16>
    %cst = arith.constant dense<0.000000e+00> : vector<256x32xf32>
    %2 = tpu.matmul %0, %1, %cst {dimension_numbers = #tpu.dot_dimension_numbers<[1], [0], [0], [1], [0, 0, 1, 1], [], []>} : vector<256x32xbf16>, vector<32x32xbf16>, vector<256x32xf32> -> vector<256x32xf32>
    %c0_3 = arith.constant 0 : index
    %c0_4 = arith.constant 0 : index
    %3 = vector.load %arg3[%c0_3, %c0_4] : memref<1x32xf32, #tpu.memory_space<vmem>>, vector<1x32xf32>
    %4 = vector.broadcast %3 : vector<1x32xf32> to vector<256x32xf32>
    %5 = arith.addf %2, %4 : vector<256x32xf32>
    %cst_5 = arith.constant 0.000000e+00 : f32
    %6 = vector.broadcast %cst_5 : f32 to vector<256x32xf32>
    %7 = arith.maximumf %5, %6 : vector<256x32xf32>
    %8 = arith.truncf %7 : vector<256x32xf32> to vector<256x32xbf16>
    %c0_6 = arith.constant 0 : index
    %c0_7 = arith.constant 0 : index
    %9 = vector.load %arg4[%c0_6, %c0_7] : memref<32x32xbf16, #tpu.memory_space<vmem>>, vector<32x32xbf16>
    %cst_8 = arith.constant dense<0.000000e+00> : vector<256x32xf32>
    %10 = tpu.matmul %8, %9, %cst_8 {dimension_numbers = #tpu.dot_dimension_numbers<[1], [0], [0], [1], [0, 0, 1, 1], [], []>} : vector<256x32xbf16>, vector<32x32xbf16>, vector<256x32xf32> -> vector<256x32xf32>
    %c0_9 = arith.constant 0 : index
    %c0_10 = arith.constant 0 : index
    %11 = vector.load %arg5[%c0_9, %c0_10] : memref<1x32xf32, #tpu.memory_space<vmem>>, vector<1x32xf32>
    %12 = vector.broadcast %11 : vector<1x32xf32> to vector<256x32xf32>
    %13 = arith.addf %10, %12 : vector<256x32xf32>
    %cst_11 = arith.constant 0.000000e+00 : f32
    %14 = vector.broadcast %cst_11 : f32 to vector<256x32xf32>
    %15 = arith.maximumf %13, %14 : vector<256x32xf32>
    %16 = arith.truncf %15 : vector<256x32xf32> to vector<256x32xbf16>
    %c0_12 = arith.constant 0 : index
    %c0_13 = arith.constant 0 : index
    %17 = vector.load %arg6[%c0_12, %c0_13] : memref<32x256xbf16, #tpu.memory_space<vmem>>, vector<32x256xbf16>
    %cst_14 = arith.constant dense<0.000000e+00> : vector<256x256xf32>
    %18 = tpu.matmul %16, %17, %cst_14 {dimension_numbers = #tpu.dot_dimension_numbers<[1], [0], [0], [1], [0, 0, 1, 1], [], []>} : vector<256x32xbf16>, vector<32x256xbf16>, vector<256x256xf32> -> vector<256x256xf32>
    %c0_15 = arith.constant 0 : index
    %c0_16 = arith.constant 0 : index
    %19 = vector.load %arg7[%c0_15, %c0_16] : memref<1x256xf32, #tpu.memory_space<vmem>>, vector<1x256xf32>
    %20 = vector.broadcast %19 : vector<1x256xf32> to vector<256x256xf32>
    %21 = arith.addf %18, %20 : vector<256x256xf32>
    %22 = vector.extract_strided_slice %21 {offsets = [0, 0], sizes = [256, 128], strides = [1, 1]} : vector<256x256xf32> to vector<256x128xf32>
    %23 = vector.extract_strided_slice %21 {offsets = [0, 128], sizes = [256, 128], strides = [1, 1]} : vector<256x256xf32> to vector<256x128xf32>
    %c0_17 = arith.constant 0 : index
    %c0_18 = arith.constant 0 : index
    %24 = vector.load %arg9[%c0_17, %c0_18] : memref<256x128xf32, #tpu.memory_space<vmem>>, vector<256x128xf32>
    tpu.vector_store %arg9[%c0_17, %c0_18], %22 {strides = array<i32>} : memref<256x128xf32, #tpu.memory_space<vmem>>, vector<256x128xf32>,
    %cst_19 = arith.constant dense<0xFF800000> : vector<256xf32>
    %25 = vector.multi_reduction <maximumf>, %22, %cst_19 [1] : vector<256x128xf32> to vector<256xf32>
    %26 = vector.shape_cast %25 : vector<256xf32> to vector<256x1xf32>
    %27 = tpu.iota {dimensions = array<i32: 1>} : vector<256x128xi32>
    %28 = vector.broadcast %26 : vector<256x1xf32> to vector<256x128xf32>
    %29 = arith.cmpf oeq, %22, %28 : vector<256x128xf32>
    %c128_i32 = arith.constant 128 : i32
    %30 = vector.broadcast %c128_i32 : i32 to vector<256x128xi32>
    %31 = arith.select %29, %27, %30 : vector<256x128xi1>, vector<256x128xi32>
    %cst_20 = arith.constant dense<2147483647> : vector<256xi32>
    %32 = vector.multi_reduction <minsi>, %31, %cst_20 [1] : vector<256x128xi32> to vector<256xi32>
    %33 = vector.shape_cast %32 : vector<256xi32> to vector<256x1xi32>
    %34 = vector.broadcast %33 : vector<256x1xi32> to vector<256x128xi32>
    %35 = arith.cmpi eq, %27, %34 : vector<256x128xi32>
    %36 = arith.extui %35 : vector<256x128xi1> to vector<256x128xi32>
    %37 = arith.sitofp %36 : vector<256x128xi32> to vector<256x128xf32>
    %38 = arith.truncf %37 : vector<256x128xf32> to vector<256x128xbf16>
    %c0_21 = arith.constant 0 : index
    %c0_22 = arith.constant 0 : index
    %39 = vector.load %arg8[%c0_21, %c0_22] : memref<128x128xbf16, #tpu.memory_space<vmem>>, vector<128x128xbf16>
    %cst_23 = arith.constant dense<0.000000e+00> : vector<256x128xf32>
    %40 = tpu.matmul %38, %39, %cst_23 {dimension_numbers = #tpu.dot_dimension_numbers<[1], [0], [0], [1], [0, 0, 1, 1], [], []>} : vector<256x128xbf16>, vector<128x128xbf16>, vector<256x128xf32> -> vector<256x128xf32>
    %41 = arith.addf %23, %40 : vector<256x128xf32>
    %42 = math.tanh %41 : vector<256x128xf32>
    %c0_24 = arith.constant 0 : index
    %c0_25 = arith.constant 0 : index
    %43 = vector.load %arg10[%c0_24, %c0_25] : memref<256x128xf32, #tpu.memory_space<vmem>>, vector<256x128xf32>
    tpu.vector_store %arg10[%c0_24, %c0_25], %42 {strides = array<i32>} : memref<256x128xf32, #tpu.memory_space<vmem>>, vector<256x128xf32>,
    return
  }
  func.func @transform_0(%arg0: i32) -> (i32, i32) {
    %c0_i32 = arith.constant 0 : i32
    %c0_i32_0 = arith.constant 0 : i32
    return %arg0, %c0_i32 : i32, i32
  }
  func.func @transform_1(%arg0: i32) -> (i32, i32) {
    %c0_i32 = arith.constant 0 : i32
    %c0_i32_0 = arith.constant 0 : i32
    %c0_i32_1 = arith.constant 0 : i32
    return %c0_i32, %c0_i32_0 : i32, i32
  }
  func.func @transform_2(%arg0: i32) -> (i32, i32) {
    %c0_i32 = arith.constant 0 : i32
    %c0_i32_0 = arith.constant 0 : i32
    %c0_i32_1 = arith.constant 0 : i32
    return %c0_i32, %c0_i32_0 : i32, i32
  }
  func.func @transform_3(%arg0: i32) -> (i32, i32) {
    %c0_i32 = arith.constant 0 : i32
    %c0_i32_0 = arith.constant 0 : i32
    %c0_i32_1 = arith.constant 0 : i32
    return %c0_i32, %c0_i32_0 : i32, i32
  }
  func.func @transform_4(%arg0: i32) -> (i32, i32) {
    %c0_i32 = arith.constant 0 : i32
    %c0_i32_0 = arith.constant 0 : i32
    %c0_i32_1 = arith.constant 0 : i32
    return %c0_i32, %c0_i32_0 : i32, i32
  }
  func.func @transform_5(%arg0: i32) -> (i32, i32) {
    %c0_i32 = arith.constant 0 : i32
    %c0_i32_0 = arith.constant 0 : i32
    %c0_i32_1 = arith.constant 0 : i32
    return %c0_i32, %c0_i32_0 : i32, i32
  }
  func.func @transform_6(%arg0: i32) -> (i32, i32) {
    %c0_i32 = arith.constant 0 : i32
    %c0_i32_0 = arith.constant 0 : i32
    %c0_i32_1 = arith.constant 0 : i32
    return %c0_i32, %c0_i32_0 : i32, i32
  }
  func.func @transform_7(%arg0: i32) -> (i32, i32) {
    %c0_i32 = arith.constant 0 : i32
    %c0_i32_0 = arith.constant 0 : i32
    %c0_i32_1 = arith.constant 0 : i32
    return %c0_i32, %c0_i32_0 : i32, i32
  }
  func.func @transform_8(%arg0: i32) -> (i32, i32) {
    %c0_i32 = arith.constant 0 : i32
    %c0_i32_0 = arith.constant 0 : i32
    return %arg0, %c0_i32 : i32, i32
  }
  func.func @transform_9(%arg0: i32) -> (i32, i32) {
    %c0_i32 = arith.constant 0 : i32
    %c0_i32_0 = arith.constant 0 : i32
    return %arg0, %c0_i32 : i32, i32
  }
}

</mosaic_0001>

<llo_original>
// kernel: actor_forward.1
$region0: #{actor_forward.1}
  #allocation0 [shape = 'u32[]', space=smem, size = 0x4, offset = 0x4, fixed_abs, tag = 'smem constant byte address 0x4 - core index']
  #allocation1 [shape = 'u32[72,128]{1,0:T(1,128)}', space=vmem, size = 0x9000, scoped, tag = 'internal scratch']
  %s0 = inlined_call_operand.vmem [shape: bf16[512,32], index: 0, kind: input, shape index: {}]
  %s1 = inlined_call_operand.vmem [shape: bf16[32,32], index: 1, kind: input, shape index: {}]
  %s2 = inlined_call_operand.vmem [shape: f32[1,32], index: 2, kind: input, shape index: {}]
  %s3 = inlined_call_operand.vmem [shape: bf16[32,32], index: 3, kind: input, shape index: {}]
  %s4 = inlined_call_operand.vmem [shape: f32[1,32], index: 4, kind: input, shape index: {}]
  %s5 = inlined_call_operand.vmem [shape: bf16[32,256], index: 5, kind: input, shape index: {}]
  %s6 = inlined_call_operand.vmem [shape: f32[1,256], index: 6, kind: input, shape index: {}]
  %s7 = inlined_call_operand.vmem [shape: bf16[128,128], index: 7, kind: input, shape index: {}]
  %s8 = inlined_call_operand.vmem [shape: f32[512,128], index: 8, kind: output, shape index: {0}]
  %s9 = inlined_call_operand.vmem [shape: f32[512,128], index: 9, kind: output, shape index: {1}]
  %10 = xla_tuple %s8, %s9
  %s11 = sld [smem:[#allocation0]]
  $region73: #{actor_forward.1} parent=0
    _
  %s13 = ssub.s32 1, %s11
  %s14 = scalar_select 0, %s13, %s11
  loop: start=0, step=1, limit=4
  $region2: #{actor_forward.1} parent=0 // loop_pre_header
    _
  $region3: #{actor_forward.1} parent=0 // loop_header
    %s16 = sphi 0, %s20
    %p17 = scmp.ge.s32.totalorder %s16, 4
    %s26 = sphi 0, %s28
    %s29 = sphi 0, %s26
    %s30 = sphi 0, %s29
    %s46 = sphi 0, %s30
    %s50 = sphi 0, %s50
    %s52 = sphi 0, %s50
    %s53 = sphi 0, %s52
    %s67 = sphi 0, %s53
    %s71 = sphi 0, %s71
    %s73 = sphi 0, %s71
    %s74 = sphi 0, %s73
    %s88 = sphi 0, %s74
    %s92 = sphi 0, %s92
    %s94 = sphi 0, %s92
    %s95 = sphi 0, %s94
    %s109 = sphi 0, %s95
    %s113 = sphi 0, %s113
    %s115 = sphi 0, %s113
    %s116 = sphi 0, %s115
    %s130 = sphi 0, %s116
    %s134 = sphi 0, %s134
    %s136 = sphi 0, %s134
    %s137 = sphi 0, %s136
    %s151 = sphi 0, %s137
    %s155 = sphi 0, %s155
    %s157 = sphi 0, %s155
    %s158 = sphi 0, %s157
    %s172 = sphi 0, %s158
    %s176 = sphi 0, %s176
    %s178 = sphi 0, %s176
    %s179 = sphi 0, %s178
    %s193 = sphi 0, %s179
    %s199 = sphi 0, %s201
    %s202 = sphi 0, %s199
    %s203 = sphi 0, %s202
    %s219 = sphi 0, %s203
    %s225 = sphi 0, %s227
    %s228 = sphi 0, %s225
    %s229 = sphi 0, %s228
    %s245 = sphi 0, %s229
  $region4: #{actor_forward.1} parent=0 // loop_header_branch
    %19 = sbr.rel (%p17) target = $region8
  $region5: #{actor_forward.1} parent=0 // loop_body
    %s21 = ssub.s32 %s16, 1
    %s22 = ssub.s32 %s16, 2
    %s23 = sadd.s32 %s16, 1
    %s24 = ssub.s32 %s16, %s23
    %p25 = scmp.eq.s32.totalorder %s24, 0
    %s27 = sadd.s32 %s26, 1
    %s28 = scalar_select %p25, %s26, %s27
    %p31 = pneg %p25
    %p32 = scmp.eq.s32.totalorder %s16, 1
    %p33 = por %p31, %p32
    %p34 = scmp.ne.s32.totalorder %s26, %s29
    %p35 = scmp.eq.s32.totalorder %s16, 0
    %p36 = por %p34, %p35
    %p37 = scmp.ne.s32.totalorder %s26, %s29
    %p38 = scmp.eq.s32.totalorder %s21, 1
    %p39 = por %p37, %p38
    %p40 = scmp.ne.s32.totalorder %s29, %s30
    %p41 = scmp.eq.s32.totalorder %s21, 0
    %p42 = por %p40, %p41
    %p43 = scmp.ne.s32.totalorder %s29, %s30
    %p44 = scmp.eq.s32.totalorder %s22, 1
    %p45 = por %p43, %p44
    %p47 = scmp.ne.s32.totalorder %s30, %s46
    %p48 = scmp.eq.s32.totalorder %s22, 0
    %p49 = por %p47, %p48
    %s51 = sadd.s32 %s50, 1
    %p54 = scmp.eq.s32.totalorder %s16, 1
    %p55 = scmp.ne.s32.totalorder %s50, %s52
    %p56 = scmp.eq.s32.totalorder %s16, 0
    %p57 = por %p55, %p56
    %p58 = scmp.ne.s32.totalorder %s50, %s52
    %p59 = scmp.eq.s32.totalorder %s21, 1
    %p60 = por %p58, %p59
    %p61 = scmp.ne.s32.totalorder %s52, %s53
    %p62 = scmp.eq.s32.totalorder %s21, 0
    %p63 = por %p61, %p62
    %p64 = scmp.ne.s32.totalorder %s52, %s53
    %p65 = scmp.eq.s32.totalorder %s22, 1
    %p66 = por %p64, %p65
    %p68 = scmp.ne.s32.totalorder %s53, %s67
    %p69 = scmp.eq.s32.totalorder %s22, 0
    %p70 = por %p68, %p69
    %s72 = sadd.s32 %s71, 1
    %p75 = scmp.eq.s32.totalorder %s16, 1
    %p76 = scmp.ne.s32.totalorder %s71, %s73
    %p77 = scmp.eq.s32.totalorder %s16, 0
    %p78 = por %p76, %p77
    %p79 = scmp.ne.s32.totalorder %s71, %s73
    %p80 = scmp.eq.s32.totalorder %s21, 1
    %p81 = por %p79, %p80
    %p82 = scmp.ne.s32.totalorder %s73, %s74
    %p83 = scmp.eq.s32.totalorder %s21, 0
    %p84 = por %p82, %p83
    %p85 = scmp.ne.s32.totalorder %s73, %s74
    %p86 = scmp.eq.s32.totalorder %s22, 1
    %p87 = por %p85, %p86
    %p89 = scmp.ne.s32.totalorder %s74, %s88
    %p90 = scmp.eq.s32.totalorder %s22, 0
    %p91 = por %p89, %p90
    %s93 = sadd.s32 %s92, 1
    %p96 = scmp.eq.s32.totalorder %s16, 1
    %p97 = scmp.ne.s32.totalorder %s92, %s94
    %p98 = scmp.eq.s32.totalorder %s16, 0
    %p99 = por %p97, %p98
    %p100 = scmp.ne.s32.totalorder %s92, %s94
    %p101 = scmp.eq.s32.totalorder %s21, 1
    %p102 = por %p100, %p101
    %p103 = scmp.ne.s32.totalorder %s94, %s95
    %p104 = scmp.eq.s32.totalorder %s21, 0
    %p105 = por %p103, %p104
    %p106 = scmp.ne.s32.totalorder %s94, %s95
    %p107 = scmp.eq.s32.totalorder %s22, 1
    %p108 = por %p106, %p107
    %p110 = scmp.ne.s32.totalorder %s95, %s109
    %p111 = scmp.eq.s32.totalorder %s22, 0
    %p112 = por %p110, %p111
    %s114 = sadd.s32 %s113, 1
    %p117 = scmp.eq.s32.totalorder %s16, 1
    %p118 = scmp.ne.s32.totalorder %s113, %s115
    %p119 = scmp.eq.s32.totalorder %s16, 0
    %p120 = por %p118, %p119
    %p121 = scmp.ne.s32.totalorder %s113, %s115
    %p122 = scmp.eq.s32.totalorder %s21, 1
    %p123 = por %p121, %p122
    %p124 = scmp.ne.s32.totalorder %s115, %s116
    %p125 = scmp.eq.s32.totalorder %s21, 0
    %p126 = por %p124, %p125
    %p127 = scmp.ne.s32.totalorder %s115, %s116
    %p128 = scmp.eq.s32.totalorder %s22, 1
    %p129 = por %p127, %p128
    %p131 = scmp.ne.s32.totalorder %s116, %s130
    %p132 = scmp.eq.s32.totalorder %s22, 0
    %p133 = por %p131, %p132
    %s135 = sadd.s32 %s134, 1
    %p138 = scmp.eq.s32.totalorder %s16, 1
    %p139 = scmp.ne.s32.totalorder %s134, %s136
    %p140 = scmp.eq.s32.totalorder %s16, 0
    %p141 = por %p139, %p140
    %p142 = scmp.ne.s32.totalorder %s134, %s136
    %p143 = scmp.eq.s32.totalorder %s21, 1
    %p144 = por %p142, %p143
    %p145 = scmp.ne.s32.totalorder %s136, %s137
    %p146 = scmp.eq.s32.totalorder %s21, 0
    %p147 = por %p145, %p146
    %p148 = scmp.ne.s32.totalorder %s136, %s137
    %p149 = scmp.eq.s32.totalorder %s22, 1
    %p150 = por %p148, %p149
    %p152 = scmp.ne.s32.totalorder %s137, %s151
    %p153 = scmp.eq.s32.totalorder %s22, 0
    %p154 = por %p152, %p153
    %s156 = sadd.s32 %s155, 1
    %p159 = scmp.eq.s32.totalorder %s16, 1
    %p160 = scmp.ne.s32.totalorder %s155, %s157
    %p161 = scmp.eq.s32.totalorder %s16, 0
    %p162 = por %p160, %p161
    %p163 = scmp.ne.s32.totalorder %s155, %s157
    %p164 = scmp.eq.s32.totalorder %s21, 1
    %p165 = por %p163, %p164
    %p166 = scmp.ne.s32.totalorder %s157, %s158
    %p167 = scmp.eq.s32.totalorder %s21, 0
    %p168 = por %p166, %p167
    %p169 = scmp.ne.s32.totalorder %s157, %s158
    %p170 = scmp.eq.s32.totalorder %s22, 1
    %p171 = por %p169, %p170
    %p173 = scmp.ne.s32.totalorder %s158, %s172
    %p174 = scmp.eq.s32.totalorder %s22, 0
    %p175 = por %p173, %p174
    %s177 = sadd.s32 %s176, 1
    %p180 = scmp.eq.s32.totalorder %s16, 1
    %p181 = scmp.ne.s32.totalorder %s176, %s178
    %p182 = scmp.eq.s32.totalorder %s16, 0
    %p183 = por %p181, %p182
    %p184 = scmp.ne.s32.totalorder %s176, %s178
    %p185 = scmp.eq.s32.totalorder %s21, 1
    %p186 = por %p184, %p185
    %p187 = scmp.ne.s32.totalorder %s178, %s179
    %p188 = scmp.eq.s32.totalorder %s21, 0
    %p189 = por %p187, %p188
    %p190 = scmp.ne.s32.totalorder %s178, %s179
    %p191 = scmp.eq.s32.totalorder %s22, 1
    %p192 = por %p190, %p191
    %p194 = scmp.ne.s32.totalorder %s179, %s193
    %p195 = scmp.eq.s32.totalorder %s22, 0
    %p196 = por %p194, %p195
    %s197 = ssub.s32 %s16, %s23
    %p198 = scmp.eq.s32.totalorder %s197, 0
    %s200 = sadd.s32 %s199, 1
    %s201 = scalar_select %p198, %s199, %s200
    %p204 = pneg %p198
    %p205 = scmp.eq.s32.totalorder %s16, 1
    %p206 = por %p204, %p205
    %p207 = scmp.ne.s32.totalorder %s199, %s202
    %p208 = scmp.eq.s32.totalorder %s16, 0
    %p209 = por %p207, %p208
    %p210 = scmp.ne.s32.totalorder %s199, %s202
    %p211 = scmp.eq.s32.totalorder %s21, 1
    %p212 = por %p210, %p211
    %p213 = scmp.ne.s32.totalorder %s202, %s203
    %p214 = scmp.eq.s32.totalorder %s21, 0
    %p215 = por %p213, %p214
    %p216 = scmp.ne.s32.totalorder %s202, %s203
    %p217 = scmp.eq.s32.totalorder %s22, 1
    %p218 = por %p216, %p217
    %p220 = scmp.ne.s32.totalorder %s203, %s219
    %p221 = scmp.eq.s32.totalorder %s22, 0
    %p222 = por %p220, %p221
    %s223 = ssub.s32 %s16, %s23
    %p224 = scmp.eq.s32.totalorder %s223, 0
    %s226 = sadd.s32 %s225, 1
    %s227 = scalar_select %p224, %s225, %s226
    %p230 = pneg %p224
    %p231 = scmp.eq.s32.totalorder %s16, 1
    %p232 = por %p230, %p231
    %p233 = scmp.ne.s32.totalorder %s225, %s228
    %p234 = scmp.eq.s32.totalorder %s16, 0
    %p235 = por %p233, %p234
    %p236 = scmp.ne.s32.totalorder %s225, %s228
    %p237 = scmp.eq.s32.totalorder %s21, 1
    %p238 = por %p236, %p237
    %p239 = scmp.ne.s32.totalorder %s228, %s229
    %p240 = scmp.eq.s32.totalorder %s21, 0
    %p241 = por %p239, %p240
    %p242 = scmp.ne.s32.totalorder %s228, %s229
    %p243 = scmp.eq.s32.totalorder %s22, 1
    %p244 = por %p242, %p243
    %p246 = scmp.ne.s32.totalorder %s229, %s245
    %p247 = scmp.eq.s32.totalorder %s22, 0
    %p248 = por %p246, %p247
    %p249 = scmp.le.s32.totalorder 1, %s16
    %p250 = scmp.lt.s32.totalorder %s16, 3
    %p251 = pnand %p249, %p250
    %p252 = pneg %p251
    // Predicated region
    $region9: #{actor_forward.1} parent=5 // pred_check
      _
    $region10: #{actor_forward.1} parent=5 // pred_check_branch
      %254 = sbr.rel (%p251) target = $region12
    $region11: #{actor_forward.1} parent=5 // pred_region
      %s255 = ssub.s32 %s16, 1
      // Predicated region
      $region13: #{actor_forward.1} parent=11 // pred_check
        %p256 = pneg %p63
      $region14: #{actor_forward.1} parent=11 // pred_check_branch
        %258 = sbr.rel (%p256) target = $region16
      $region15: #{actor_forward.1} parent=11 // pred_region
        _
      $region16: #{actor_forward.1} parent=11 // pred_fallthru
        _
      // Predicated region
      $region17: #{actor_forward.1} parent=11 // pred_check
        %p259 = pneg %p84
      $region18: #{actor_forward.1} parent=11 // pred_check_branch
        %261 = sbr.rel (%p259) target = $region20
      $region19: #{actor_forward.1} parent=11 // pred_region
        _
      $region20: #{actor_forward.1} parent=11 // pred_fallthru
        _
      // Predicated region
      $region21: #{actor_forward.1} parent=11 // pred_check
        %p262 = pneg %p105
      $region22: #{actor_forward.1} parent=11 // pred_check_branch
        %264 = sbr.rel (%p262) target = $region24
      $region23: #{actor_forward.1} parent=11 // pred_region
        _
      $region24: #{actor_forward.1} parent=11 // pred_fallthru
        _
      // Predicated region
      $region25: #{actor_forward.1} parent=11 // pred_check
        %p265 = pneg %p126
      $region26: #{actor_forward.1} parent=11 // pred_check_branch
        %267 = sbr.rel (%p265) target = $region28
      $region27: #{actor_forward.1} parent=11 // pred_region
        _
      $region28: #{actor_forward.1} parent=11 // pred_fallthru
        _
      // Predicated region
      $region29: #{actor_forward.1} parent=11 // pred_check
        %p268 = pneg %p147
      $region30: #{actor_forward.1} parent=11 // pred_check_branch
        %270 = sbr.rel (%p268) target = $region32
      $region31: #{actor_forward.1} parent=11 // pred_region
        _
      $region32: #{actor_forward.1} parent=11 // pred_fallthru
        _
      // Predicated region
      $region33: #{actor_forward.1} parent=11 // pred_check
        %p271 = pneg %p168
      $region34: #{actor_forward.1} parent=11 // pred_check_branch
        %273 = sbr.rel (%p271) target = $region36
      $region35: #{actor_forward.1} parent=11 // pred_region
        _
      $region36: #{actor_forward.1} parent=11 // pred_fallthru
        _
      // Predicated region
      $region37: #{actor_forward.1} parent=11 // pred_check
        %p274 = pneg %p189
      $region38: #{actor_forward.1} parent=11 // pred_check_branch
        %276 = sbr.rel (%p274) target = $region40
      $region39: #{actor_forward.1} parent=11 // pred_region
        _
      $region40: #{actor_forward.1} parent=11 // pred_fallthru
        _
    $region12: #{actor_forward.1} parent=5 // pred_fallthru
      _
    %p277 = scmp.lt.s32.totalorder %s16, 2
    // Predicated region
    $region41: #{actor_forward.1} parent=5 // pred_check
      %p278 = pneg %p277
    $region42: #{actor_forward.1} parent=5 // pred_check_branch
      %280 = sbr.rel (%p278) target = $region44
    $region43: #{actor_forward.1} parent=5 // pred_region
      // Predicated region
      $region45: #{actor_forward.1} parent=43 // pred_check
        %p281 = pneg %p36
      $region46: #{actor_forward.1} parent=43 // pred_check_branch
        %283 = sbr.rel (%p281) target = $region48
      $region47: #{actor_forward.1} parent=43 // pred_region
        %s284 = smul.u32 32, %s16
        %p285 = scmp.lt.s32.totalorder %s284, 63
        %s286 = scalar_select %p285, %s284, 63
        %s287 = smul.addr %s286, 4
        %s288 = scalar_lea.vmem %s0, %s287
        %s289 = smul.u32 32, %s16
      $region48: #{actor_forward.1} parent=43 // pred_fallthru
        _
    $region44: #{actor_forward.1} parent=5 // pred_fallthru
      _
    %p290 = scmp.le.s32.totalorder 1, %s16
    %p291 = scmp.lt.s32.totalorder %s16, 3
    %p292 = pnand %p290, %p291
    %p293 = pneg %p292
    // Predicated region
    $region49: #{actor_forward.1} parent=5 // pred_check
      _
    $region50: #{actor_forward.1} parent=5 // pred_check_branch
      %295 = sbr.rel (%p292) target = $region52
    $region51: #{actor_forward.1} parent=5 // pred_region
      %s296 = ssub.s32 %s16, 1
      %s297 = smul.u32 32, %s21
      %p298 = scmp.lt.s32.totalorder %s297, 63
      %s299 = scalar_select %p298, %s297, 63
      %s300 = smul.addr %s299, 4
      %s301 = scalar_lea.vmem %s0, %s300
      %p302 = pneg %p42
      %p303 = pneg %p39
      %p304 = pneg %p63
      %p305 = pneg %p60
      %p306 = pneg %p84
      %p307 = pneg %p81
      %p308 = pneg %p105
      %p309 = pneg %p102
      %p310 = pneg %p126
      %p311 = pneg %p123
      %p312 = pneg %p147
      %p313 = pneg %p144
      %p314 = pneg %p168
      %p315 = pneg %p165
      %p316 = pneg %p189
      %p317 = pneg %p186
      %p318 = pneg %p215
      %p319 = pneg %p212
      %s320 = smul.u32 32, %s21
      %p321 = scmp.lt.s32.totalorder %s320, 63
      %s322 = scalar_select %p321, %s320, 63
      %s323 = smul.addr %s322, 8
      %s324 = scalar_lea.vmem %s8, %s323
      %p325 = pneg %p241
      %p326 = pneg %p238
      %s327 = smul.u32 32, %s21
      %p328 = scmp.lt.s32.totalorder %s327, 63
      %s329 = scalar_select %p328, %s327, 63
      %s330 = smul.addr %s329, 8
      %s331 = scalar_lea.vmem %s9, %s330
      %s332 = smul.u32 32, %s21
      %p333 = scmp.lt.s32.totalorder %s332, 63
      %s334 = scalar_select %p333, %s332, 63
      %s335 = smul.addr %s334, 4
      %s336 = scalar_lea.vmem %s0, %s335
      %s337 = smul.u32 32, %s21
      %s338 = smul.u32 32, %s21
      %p339 = scmp.lt.s32.totalorder %s338, 63
      %s340 = scalar_select %p339, %s338, 63
      %s341 = smul.addr %s340, 8
      %s342 = scalar_lea.vmem %s8, %s341
      %s343 = smul.u32 32, %s21
      %s344 = smul.u32 32, %s21
      %p345 = scmp.lt.s32.totalorder %s344, 63
      %s346 = scalar_select %p345, %s344, 63
      %s347 = smul.addr %s346, 8
      %s348 = scalar_lea.vmem %s9, %s347
      %s349 = smul.u32 32, %s21
      %v351 = vld [vmem:[%s336] sm:$0xf]
      %v352 = vld [vmem:[%s336 + $0x4] sm:$0xf]
      %v353 = vld [vmem:[%s336 + $0x8] sm:$0xf]
      %v354 = vld [vmem:[%s336 + $0xc] sm:$0xf]
      %v355 = vld [vmem:[%s336 + $0x10] sm:$0xf]
      %v356 = vld [vmem:[%s336 + $0x14] sm:$0xf]
      %v357 = vld [vmem:[%s336 + $0x18] sm:$0xf]
      %v358 = vld [vmem:[%s336 + $0x1c] sm:$0xf]
      %v359 = vld [vmem:[%s336 + $0x20] sm:$0xf]
      %v360 = vld [vmem:[%s336 + $0x24] sm:$0xf]
      %v361 = vld [vmem:[%s336 + $0x28] sm:$0xf]
      %v362 = vld [vmem:[%s336 + $0x2c] sm:$0xf]
      %v363 = vld [vmem:[%s336 + $0x30] sm:$0xf]
      %v364 = vld [vmem:[%s336 + $0x34] sm:$0xf]
      %v365 = vld [vmem:[%s336 + $0x38] sm:$0xf]
      %v366 = vld [vmem:[%s336 + $0x3c] sm:$0xf]
      %v367 = vld [vmem:[%s336 + $0x40] sm:$0xf]
      %v368 = vld [vmem:[%s336 + $0x44] sm:$0xf]
      %v369 = vld [vmem:[%s336 + $0x48] sm:$0xf]
      %v370 = vld [vmem:[%s336 + $0x4c] sm:$0xf]
      %v371 = vld [vmem:[%s336 + $0x50] sm:$0xf]
      %v372 = vld [vmem:[%s336 + $0x54] sm:$0xf]
      %v373 = vld [vmem:[%s336 + $0x58] sm:$0xf]
      %v374 = vld [vmem:[%s336 + $0x5c] sm:$0xf]
      %v375 = vld [vmem:[%s336 + $0x60] sm:$0xf]
      %v376 = vld [vmem:[%s336 + $0x64] sm:$0xf]
      %v377 = vld [vmem:[%s336 + $0x68] sm:$0xf]
      %v378 = vld [vmem:[%s336 + $0x6c] sm:$0xf]
      %v379 = vld [vmem:[%s336 + $0x70] sm:$0xf]
      %v380 = vld [vmem:[%s336 + $0x74] sm:$0xf]
      %v381 = vld [vmem:[%s336 + $0x78] sm:$0xf]
      %v382 = vld [vmem:[%s336 + $0x7c] sm:$0xf]
      %v383 = vld [vmem:[%s1] sm:$0xf]
      %v384 = vld [vmem:[%s1 + $0x4] sm:$0xf]
      %v385 = vld [vmem:[%s1 + $0x8] sm:$0xf]
      %v386 = vld [vmem:[%s1 + $0xc] sm:$0xf]
      %v387 = vld [vmem:[%s2] sm:$0x1]
      %v389 = vperm.slane %v387, 0
      %v423 = vunpack.c.l.b16 %v351
      %v424 = vunpack.c.l.b16 %v352
      %v425 = vunpack.c.l.b16 %v353
      %v426 = vunpack.c.l.b16 %v354
      %v427 = vunpack.c.l.b16 %v355
      %v428 = vunpack.c.l.b16 %v356
      %v429 = vunpack.c.l.b16 %v357
      %v430 = vunpack.c.l.b16 %v358
      %v431 = vunpack.c.l.b16 %v359
      %v432 = vunpack.c.l.b16 %v360
      %v433 = vunpack.c.l.b16 %v361
      %v434 = vunpack.c.l.b16 %v362
      %v435 = vunpack.c.l.b16 %v363
      %v436 = vunpack.c.l.b16 %v364
      %v437 = vunpack.c.l.b16 %v365
      %v438 = vunpack.c.l.b16 %v366
      %v439 = vunpack.c.l.b16 %v367
      %v440 = vunpack.c.l.b16 %v368
      %v441 = vunpack.c.l.b16 %v369
      %v442 = vunpack.c.l.b16 %v370
      %v443 = vunpack.c.l.b16 %v371
      %v444 = vunpack.c.l.b16 %v372
      %v445 = vunpack.c.l.b16 %v373
      %v446 = vunpack.c.l.b16 %v374
      %v447 = vunpack.c.l.b16 %v375
      %v448 = vunpack.c.l.b16 %v376
      %v449 = vunpack.c.l.b16 %v377
      %v450 = vunpack.c.l.b16 %v378
      %v451 = vunpack.c.l.b16 %v379
      %v452 = vunpack.c.l.b16 %v380
      %v453 = vunpack.c.l.b16 %v381
      %v454 = vunpack.c.l.b16 %v382
      %v455 = vpack.c.b16 %v424, %v423
      %v456 = vpack.c.b16 %v426, %v425
      %v457 = vpack.c.b16 %v428, %v427
      %v458 = vpack.c.b16 %v430, %v429
      %v459 = vpack.c.b16 %v432, %v431
      %v460 = vpack.c.b16 %v434, %v433
      %v461 = vpack.c.b16 %v436, %v435
      %v462 = vpack.c.b16 %v438, %v437
      %v463 = vpack.c.b16 %v440, %v439
      %v464 = vpack.c.b16 %v442, %v441
      %v465 = vpack.c.b16 %v444, %v443
      %v466 = vpack.c.b16 %v446, %v445
      %v467 = vpack.c.b16 %v448, %v447
      %v468 = vpack.c.b16 %v450, %v449
      %v469 = vpack.c.b16 %v452, %v451
      %v470 = vpack.c.b16 %v454, %v453
      %v475 = vunpack.c.l.b16 %v383
      %v476 = vunpack.c.l.b16 %v384
      %v477 = vunpack.c.l.b16 %v385
      %v478 = vunpack.c.l.b16 %v386
      %v479 = vpack.c.b16 %v476, %v475
      %v480 = vpack.c.b16 %v478, %v477
      %vm483 = vcmask 261120
      %v485 = vsel %vm483, %v455, 0
      %v488 = vsel %vm483, %v456, 0
      %v491 = vsel %vm483, %v457, 0
      %v494 = vsel %vm483, %v458, 0
      %v497 = vsel %vm483, %v459, 0
      %v500 = vsel %vm483, %v460, 0
      %v503 = vsel %vm483, %v461, 0
      %v506 = vsel %vm483, %v462, 0
      %v509 = vsel %vm483, %v463, 0
      %v512 = vsel %vm483, %v464, 0
      %v515 = vsel %vm483, %v465, 0
      %v518 = vsel %vm483, %v466, 0
      %v521 = vsel %vm483, %v467, 0
      %v524 = vsel %vm483, %v468, 0
      %v527 = vsel %vm483, %v469, 0
      %v530 = vsel %vm483, %v470, 0
      %532 = vmatpush.bf16.msra.mxu0 0
      %533 = vmatpush.bf16.msra.mxu0 0
      %534 = vmatpush.bf16.msra.mxu0 0
      %535 = vmatpush.bf16.msra.mxu0 0
      %536 = vmatpush.bf16.msra.mxu0 0
      %537 = vmatpush.bf16.msra.mxu0 0
      %538 = vmatpush.bf16.msra.mxu0 %v480
      %539 = vmatpush.bf16.msra.mxu0 %v479
      %540 = vmatmul.bf16.gmra.mxu0 %v485
      %v541 = vpop.f32.mrf.mxu0
      %v542 = vadd.f32 %v389, %v541
      %v543 = vpop.f32.mrf.mxu0
      %v544 = vadd.f32 %v389, %v543
      %545 = vmatmul.bf16.gmra.mxu0 %v488
      %v546 = vpop.f32.mrf.mxu0
      %v547 = vadd.f32 %v389, %v546
      %v548 = vpop.f32.mrf.mxu0
      %v549 = vadd.f32 %v389, %v548
      %550 = vmatmul.bf16.gmra.mxu0 %v491
      %v551 = vpop.f32.mrf.mxu0
      %v552 = vadd.f32 %v389, %v551
      %v553 = vpop.f32.mrf.mxu0
      %v554 = vadd.f32 %v389, %v553
      %555 = vmatmul.bf16.gmra.mxu0 %v494
      %v556 = vpop.f32.mrf.mxu0
      %v557 = vadd.f32 %v389, %v556
      %v558 = vpop.f32.mrf.mxu0
      %v559 = vadd.f32 %v389, %v558
      %560 = vmatmul.bf16.gmra.mxu0 %v497
      %v561 = vpop.f32.mrf.mxu0
      %v562 = vadd.f32 %v389, %v561
      %v563 = vpop.f32.mrf.mxu0
      %v564 = vadd.f32 %v389, %v563
      %565 = vmatmul.bf16.gmra.mxu0 %v500
      %v566 = vpop.f32.mrf.mxu0
      %v567 = vadd.f32 %v389, %v566
      %v568 = vpop.f32.mrf.mxu0
      %v569 = vadd.f32 %v389, %v568
      %570 = vmatmul.bf16.gmra.mxu0 %v503
      %v571 = vpop.f32.mrf.mxu0
      %v572 = vadd.f32 %v389, %v571
      %v573 = vpop.f32.mrf.mxu0
      %v574 = vadd.f32 %v389, %v573
      %575 = vmatmul.bf16.gmra.mxu0 %v506
      %v576 = vpop.f32.mrf.mxu0
      %v577 = vadd.f32 %v389, %v576
      %v578 = vpop.f32.mrf.mxu0
      %v579 = vadd.f32 %v389, %v578
      %580 = vmatmul.bf16.gmra.mxu0 %v509
      %v581 = vpop.f32.mrf.mxu0
      %v582 = vadd.f32 %v389, %v581
      %v583 = vpop.f32.mrf.mxu0
      %v584 = vadd.f32 %v389, %v583
      %585 = vmatmul.bf16.gmra.mxu0 %v512
      %v586 = vpop.f32.mrf.mxu0
      %v587 = vadd.f32 %v389, %v586
      %v588 = vpop.f32.mrf.mxu0
      %v589 = vadd.f32 %v389, %v588
      %590 = vmatmul.bf16.gmra.mxu0 %v515
      %v591 = vpop.f32.mrf.mxu0
      %v592 = vadd.f32 %v389, %v591
      %v593 = vpop.f32.mrf.mxu0
      %v594 = vadd.f32 %v389, %v593
      %595 = vmatmul.bf16.gmra.mxu0 %v518
      %v596 = vpop.f32.mrf.mxu0
      %v597 = vadd.f32 %v389, %v596
      %v598 = vpop.f32.mrf.mxu0
      %v599 = vadd.f32 %v389, %v598
      %600 = vmatmul.bf16.gmra.mxu0 %v521
      %v601 = vpop.f32.mrf.mxu0
      %v602 = vadd.f32 %v389, %v601
      %v603 = vpop.f32.mrf.mxu0
      %v604 = vadd.f32 %v389, %v603
      %605 = vmatmul.bf16.gmra.mxu0 %v524
      %v606 = vpop.f32.mrf.mxu0
      %v607 = vadd.f32 %v389, %v606
      %v608 = vpop.f32.mrf.mxu0
      %v609 = vadd.f32 %v389, %v608
      %610 = vmatmul.bf16.gmra.mxu0 %v527
      %v611 = vpop.f32.mrf.mxu0
      %v612 = vadd.f32 %v389, %v611
      %v613 = vpop.f32.mrf.mxu0
      %v614 = vadd.f32 %v389, %v613
      %615 = vmatmul.bf16.gmra.mxu0 %v530
      %v616 = vpop.f32.mrf.mxu0
      %v617 = vadd.f32 %v389, %v616
      %v618 = vpop.f32.mrf.mxu0
      %v619 = vadd.f32 %v389, %v618
      %620 = vdwg.mxu0
      %v621 = vmax.f32 %v542, 0.0
      %v622 = vmax.f32 %v544, 0.0
      %v623 = vmax.f32 %v547, 0.0
      %v624 = vmax.f32 %v549, 0.0
      %v625 = vmax.f32 %v552, 0.0
      %v626 = vmax.f32 %v554, 0.0
      %v627 = vmax.f32 %v557, 0.0
      %v628 = vmax.f32 %v559, 0.0
      %v629 = vmax.f32 %v562, 0.0
      %v630 = vmax.f32 %v564, 0.0
      %v631 = vmax.f32 %v567, 0.0
      %v632 = vmax.f32 %v569, 0.0
      %v633 = vmax.f32 %v572, 0.0
      %v634 = vmax.f32 %v574, 0.0
      %v635 = vmax.f32 %v577, 0.0
      %v636 = vmax.f32 %v579, 0.0
      %v637 = vmax.f32 %v582, 0.0
      %v638 = vmax.f32 %v584, 0.0
      %v639 = vmax.f32 %v587, 0.0
      %v640 = vmax.f32 %v589, 0.0
      %v641 = vmax.f32 %v592, 0.0
      %v642 = vmax.f32 %v594, 0.0
      %v643 = vmax.f32 %v597, 0.0
      %v644 = vmax.f32 %v599, 0.0
      %v645 = vmax.f32 %v602, 0.0
      %v646 = vmax.f32 %v604, 0.0
      %v647 = vmax.f32 %v607, 0.0
      %v648 = vmax.f32 %v609, 0.0
      %v649 = vmax.f32 %v612, 0.0
      %v650 = vmax.f32 %v614, 0.0
      %v651 = vmax.f32 %v617, 0.0
      %v652 = vmax.f32 %v619, 0.0
      %v653 = vpack.c.bf16 %v622, %v621
      %v654 = vpack.c.bf16 %v624, %v623
      %v655 = vpack.c.bf16 %v626, %v625
      %v656 = vpack.c.bf16 %v628, %v627
      %v657 = vpack.c.bf16 %v630, %v629
      %v658 = vpack.c.bf16 %v632, %v631
      %v659 = vpack.c.bf16 %v634, %v633
      %v660 = vpack.c.bf16 %v636, %v635
      %v661 = vpack.c.bf16 %v638, %v637
      %v662 = vpack.c.bf16 %v640, %v639
      %v663 = vpack.c.bf16 %v642, %v641
      %v664 = vpack.c.bf16 %v644, %v643
      %v665 = vpack.c.bf16 %v646, %v645
      %v666 = vpack.c.bf16 %v648, %v647
      %v667 = vpack.c.bf16 %v650, %v649
      %v668 = vpack.c.bf16 %v652, %v651
      %v669 = vld [vmem:[%s3] sm:$0xf]
      %v670 = vld [vmem:[%s3 + $0x4] sm:$0xf]
      %v671 = vld [vmem:[%s3 + $0x8] sm:$0xf]
      %v672 = vld [vmem:[%s3 + $0xc] sm:$0xf]
      %v673 = vld [vmem:[%s4] sm:$0x1]
      %v675 = vperm.slane %v673, 0
      %v681 = vunpack.c.l.b16 %v669
      %v682 = vunpack.c.l.b16 %v670
      %v683 = vunpack.c.l.b16 %v671
      %v684 = vunpack.c.l.b16 %v672
      %v685 = vpack.c.b16 %v682, %v681
      %v686 = vpack.c.b16 %v684, %v683
      %v690 = vsel %vm483, %v653, 0
      %v693 = vsel %vm483, %v654, 0
      %v696 = vsel %vm483, %v655, 0
      %v699 = vsel %vm483, %v656, 0
      %v702 = vsel %vm483, %v657, 0
      %v705 = vsel %vm483, %v658, 0
      %v708 = vsel %vm483, %v659, 0
      %v711 = vsel %vm483, %v660, 0
      %v714 = vsel %vm483, %v661, 0
      %v717 = vsel %vm483, %v662, 0
      %v720 = vsel %vm483, %v663, 0
      %v723 = vsel %vm483, %v664, 0
      %v726 = vsel %vm483, %v665, 0
      %v729 = vsel %vm483, %v666, 0
      %v732 = vsel %vm483, %v667, 0
      %v735 = vsel %vm483, %v668, 0
      %737 = vmatpush.bf16.msra.mxu0 0
      %738 = vmatpush.bf16.msra.mxu0 0
      %739 = vmatpush.bf16.msra.mxu0 0
      %740 = vmatpush.bf16.msra.mxu0 0
      %741 = vmatpush.bf16.msra.mxu0 0
      %742 = vmatpush.bf16.msra.mxu0 0
      %743 = vmatpush.bf16.msra.mxu0 %v686
      %744 = vmatpush.bf16.msra.mxu0 %v685
      %745 = vmatmul.bf16.gmra.mxu0 %v690
      %v746 = vpop.f32.mrf.mxu0
      %v747 = vadd.f32 %v675, %v746
      %v748 = vpop.f32.mrf.mxu0
      %v749 = vadd.f32 %v675, %v748
      %750 = vmatmul.bf16.gmra.mxu0 %v693
      %v751 = vpop.f32.mrf.mxu0
      %v752 = vadd.f32 %v675, %v751
      %v753 = vpop.f32.mrf.mxu0
      %v754 = vadd.f32 %v675, %v753
      %755 = vmatmul.bf16.gmra.mxu0 %v696
      %v756 = vpop.f32.mrf.mxu0
      %v757 = vadd.f32 %v675, %v756
      %v758 = vpop.f32.mrf.mxu0
      %v759 = vadd.f32 %v675, %v758
      %760 = vmatmul.bf16.gmra.mxu0 %v699
      %v761 = vpop.f32.mrf.mxu0
      %v762 = vadd.f32 %v675, %v761
      %v763 = vpop.f32.mrf.mxu0
      %v764 = vadd.f32 %v675, %v763
      %765 = vmatmul.bf16.gmra.mxu0 %v702
      %v766 = vpop.f32.mrf.mxu0
      %v767 = vadd.f32 %v675, %v766
      %v768 = vpop.f32.mrf.mxu0
      %v769 = vadd.f32 %v675, %v768
      %770 = vmatmul.bf16.gmra.mxu0 %v705
      %v771 = vpop.f32.mrf.mxu0
      %v772 = vadd.f32 %v675, %v771
      %v773 = vpop.f32.mrf.mxu0
      %v774 = vadd.f32 %v675, %v773
      %775 = vmatmul.bf16.gmra.mxu0 %v708
      %v776 = vpop.f32.mrf.mxu0
      %v777 = vadd.f32 %v675, %v776
      %v778 = vpop.f32.mrf.mxu0
      %v779 = vadd.f32 %v675, %v778
      %780 = vmatmul.bf16.gmra.mxu0 %v711
      %v781 = vpop.f32.mrf.mxu0
      %v782 = vadd.f32 %v675, %v781
      %v783 = vpop.f32.mrf.mxu0
      %v784 = vadd.f32 %v675, %v783
      %785 = vmatmul.bf16.gmra.mxu0 %v714
      %v786 = vpop.f32.mrf.mxu0
      %v787 = vadd.f32 %v675, %v786
      %v788 = vpop.f32.mrf.mxu0
      %v789 = vadd.f32 %v675, %v788
      %790 = vmatmul.bf16.gmra.mxu0 %v717
      %v791 = vpop.f32.mrf.mxu0
      %v792 = vadd.f32 %v675, %v791
      %v793 = vpop.f32.mrf.mxu0
      %v794 = vadd.f32 %v675, %v793
      %795 = vmatmul.bf16.gmra.mxu0 %v720
      %v796 = vpop.f32.mrf.mxu0
      %v797 = vadd.f32 %v675, %v796
      %v798 = vpop.f32.mrf.mxu0
      %v799 = vadd.f32 %v675, %v798
      %800 = vmatmul.bf16.gmra.mxu0 %v723
      %v801 = vpop.f32.mrf.mxu0
      %v802 = vadd.f32 %v675, %v801
      %v803 = vpop.f32.mrf.mxu0
      %v804 = vadd.f32 %v675, %v803
      %805 = vmatmul.bf16.gmra.mxu0 %v726
      %v806 = vpop.f32.mrf.mxu0
      %v807 = vadd.f32 %v675, %v806
      %v808 = vpop.f32.mrf.mxu0
      %v809 = vadd.f32 %v675, %v808
      %810 = vmatmul.bf16.gmra.mxu0 %v729
      %v811 = vpop.f32.mrf.mxu0
      %v812 = vadd.f32 %v675, %v811
      %v813 = vpop.f32.mrf.mxu0
      %v814 = vadd.f32 %v675, %v813
      %815 = vmatmul.bf16.gmra.mxu0 %v732
      %v816 = vpop.f32.mrf.mxu0
      %v817 = vadd.f32 %v675, %v816
      %v818 = vpop.f32.mrf.mxu0
      %v819 = vadd.f32 %v675, %v818
      %820 = vmatmul.bf16.gmra.mxu0 %v735
      %v821 = vpop.f32.mrf.mxu0
      %v822 = vadd.f32 %v675, %v821
      %v823 = vpop.f32.mrf.mxu0
      %v824 = vadd.f32 %v675, %v823
      %825 = vdwg.mxu0
      %v826 = vmax.f32 %v747, 0.0
      %v827 = vmax.f32 %v749, 0.0
      %v828 = vmax.f32 %v752, 0.0
      %v829 = vmax.f32 %v754, 0.0
      %v830 = vmax.f32 %v757, 0.0
      %v831 = vmax.f32 %v759, 0.0
      %v832 = vmax.f32 %v762, 0.0
      %v833 = vmax.f32 %v764, 0.0
      %v834 = vmax.f32 %v767, 0.0
      %v835 = vmax.f32 %v769, 0.0
      %v836 = vmax.f32 %v772, 0.0
      %v837 = vmax.f32 %v774, 0.0
      %v838 = vmax.f32 %v777, 0.0
      %v839 = vmax.f32 %v779, 0.0
      %v840 = vmax.f32 %v782, 0.0
      %v841 = vmax.f32 %v784, 0.0
      %v842 = vmax.f32 %v787, 0.0
      %v843 = vmax.f32 %v789, 0.0
      %v844 = vmax.f32 %v792, 0.0
      %v845 = vmax.f32 %v794, 0.0
      %v846 = vmax.f32 %v797, 0.0
      %v847 = vmax.f32 %v799, 0.0
      %v848 = vmax.f32 %v802, 0.0
      %v849 = vmax.f32 %v804, 0.0
      %v850 = vmax.f32 %v807, 0.0
      %v851 = vmax.f32 %v809, 0.0
      %v852 = vmax.f32 %v812, 0.0
      %v853 = vmax.f32 %v814, 0.0
      %v854 = vmax.f32 %v817, 0.0
      %v855 = vmax.f32 %v819, 0.0
      %v856 = vmax.f32 %v822, 0.0
      %v857 = vmax.f32 %v824, 0.0
      %v858 = vpack.c.bf16 %v827, %v826
      %v859 = vpack.c.bf16 %v829, %v828
      %v860 = vpack.c.bf16 %v831, %v830
      %v861 = vpack.c.bf16 %v833, %v832
      %v862 = vpack.c.bf16 %v835, %v834
      %v863 = vpack.c.bf16 %v837, %v836
      %v864 = vpack.c.bf16 %v839, %v838
      %v865 = vpack.c.bf16 %v841, %v840
      %v866 = vpack.c.bf16 %v843, %v842
      %v867 = vpack.c.bf16 %v845, %v844
      %v868 = vpack.c.bf16 %v847, %v846
      %v869 = vpack.c.bf16 %v849, %v848
      %v870 = vpack.c.bf16 %v851, %v850
      %v871 = vpack.c.bf16 %v853, %v852
      %v872 = vpack.c.bf16 %v855, %v854
      %v873 = vpack.c.bf16 %v857, %v856
      %v874 = vld [vmem:[%s5] sm:$0xff]
      %v875 = vld [vmem:[%s5 + $0x8] sm:$0xff]
      %v876 = vld [vmem:[%s5 + $0x10] sm:$0xff]
      %v877 = vld [vmem:[%s5 + $0x18] sm:$0xff]
      %v878 = vld [vmem:[%s6] sm:$0x3]
      %v880 = vperm.slane %v878, 0
      %v881 = vperm.slane %v878, 1
      %v888 = vunpack.c.l.b16 %v874
      %v889 = vunpack.c.h.b16 %v874
      %v890 = vunpack.c.l.b16 %v875
      %v891 = vunpack.c.h.b16 %v875
      %v892 = vunpack.c.l.b16 %v876
      %v893 = vunpack.c.h.b16 %v876
      %v894 = vunpack.c.l.b16 %v877
      %v895 = vunpack.c.h.b16 %v877
      %v896 = vpack.c.b16 %v890, %v888
      %v897 = vpack.c.b16 %v891, %v889
      %v898 = vpack.c.b16 %v894, %v892
      %v899 = vpack.c.b16 %v895, %v893
      %v905 = vsel %vm483, %v858, 0
      %v908 = vsel %vm483, %v859, 0
      %v911 = vsel %vm483, %v860, 0
      %v914 = vsel %vm483, %v861, 0
      %v917 = vsel %vm483, %v862, 0
      %v920 = vsel %vm483, %v863, 0
      %v923 = vsel %vm483, %v864, 0
      %v926 = vsel %vm483, %v865, 0
      %v929 = vsel %vm483, %v866, 0
      %v932 = vsel %vm483, %v867, 0
      %v935 = vsel %vm483, %v868, 0
      %v938 = vsel %vm483, %v869, 0
      %v941 = vsel %vm483, %v870, 0
      %v944 = vsel %vm483, %v871, 0
      %v947 = vsel %vm483, %v872, 0
      %v950 = vsel %vm483, %v873, 0
      %952 = vmatpush.bf16.msra.mxu0 0
      %953 = vmatpush.bf16.msra.mxu0 0
      %954 = vmatpush.bf16.msra.mxu0 0
      %955 = vmatpush.bf16.msra.mxu0 0
      %956 = vmatpush.bf16.msra.mxu0 0
      %957 = vmatpush.bf16.msra.mxu0 0
      %958 = vmatpush.bf16.msra.mxu0 %v898
      %959 = vmatpush.bf16.msra.mxu0 %v896
      %960 = vmatmul.bf16.gmra.mxu0 %v905
      %v961 = vpop.f32.mrf.mxu0
      %v962 = vadd.f32 %v880, %v961
      %v963 = vpop.f32.mrf.mxu0
      %v964 = vadd.f32 %v880, %v963
      %965 = vmatmul.bf16.gmra.mxu0 %v908
      %v966 = vpop.f32.mrf.mxu0
      %v967 = vadd.f32 %v880, %v966
      %v968 = vpop.f32.mrf.mxu0
      %v969 = vadd.f32 %v880, %v968
      %970 = vmatmul.bf16.gmra.mxu0 %v911
      %v971 = vpop.f32.mrf.mxu0
      %v972 = vadd.f32 %v880, %v971
      %v973 = vpop.f32.mrf.mxu0
      %v974 = vadd.f32 %v880, %v973
      %975 = vmatmul.bf16.gmra.mxu0 %v914
      %v976 = vpop.f32.mrf.mxu0
      %v977 = vadd.f32 %v880, %v976
      %v978 = vpop.f32.mrf.mxu0
      %v979 = vadd.f32 %v880, %v978
      %980 = vmatmul.bf16.gmra.mxu0 %v917
      %v981 = vpop.f32.mrf.mxu0
      %v982 = vadd.f32 %v880, %v981
      %v983 = vpop.f32.mrf.mxu0
      %v984 = vadd.f32 %v880, %v983
      %985 = vmatmul.bf16.gmra.mxu0 %v920
      %v986 = vpop.f32.mrf.mxu0
      %v987 = vadd.f32 %v880, %v986
      %v988 = vpop.f32.mrf.mxu0
      %v989 = vadd.f32 %v880, %v988
      %990 = vmatmul.bf16.gmra.mxu0 %v923
      %v991 = vpop.f32.mrf.mxu0
      %v992 = vadd.f32 %v880, %v991
      %v993 = vpop.f32.mrf.mxu0
      %v994 = vadd.f32 %v880, %v993
      %995 = vmatmul.bf16.gmra.mxu0 %v926
      %v996 = vpop.f32.mrf.mxu0
      %v997 = vadd.f32 %v880, %v996
      %v998 = vpop.f32.mrf.mxu0
      %v999 = vadd.f32 %v880, %v998
      %1000 = vmatmul.bf16.gmra.mxu0 %v929
      %v1001 = vpop.f32.mrf.mxu0
      %v1002 = vadd.f32 %v880, %v1001
      %v1003 = vpop.f32.mrf.mxu0
      %v1004 = vadd.f32 %v880, %v1003
      %1005 = vmatmul.bf16.gmra.mxu0 %v932
      %v1006 = vpop.f32.mrf.mxu0
      %v1007 = vadd.f32 %v880, %v1006
      %v1008 = vpop.f32.mrf.mxu0
      %v1009 = vadd.f32 %v880, %v1008
      %1010 = vmatmul.bf16.gmra.mxu0 %v935
      %v1011 = vpop.f32.mrf.mxu0
      %v1012 = vadd.f32 %v880, %v1011
      %v1013 = vpop.f32.mrf.mxu0
      %v1014 = vadd.f32 %v880, %v1013
      %1015 = vmatmul.bf16.gmra.mxu0 %v938
      %v1016 = vpop.f32.mrf.mxu0
      %v1017 = vadd.f32 %v880, %v1016
      %v1018 = vpop.f32.mrf.mxu0
      %v1019 = vadd.f32 %v880, %v1018
      %1020 = vmatmul.bf16.gmra.mxu0 %v941
      %v1021 = vpop.f32.mrf.mxu0
      %v1022 = vadd.f32 %v880, %v1021
      %v1023 = vpop.f32.mrf.mxu0
      %v1024 = vadd.f32 %v880, %v1023
      %1025 = vmatmul.bf16.gmra.mxu0 %v944
      %v1026 = vpop.f32.mrf.mxu0
      %v1027 = vadd.f32 %v880, %v1026
      %v1028 = vpop.f32.mrf.mxu0
      %v1029 = vadd.f32 %v880, %v1028
      %1030 = vmatmul.bf16.gmra.mxu0 %v947
      %v1031 = vpop.f32.mrf.mxu0
      %v1032 = vadd.f32 %v880, %v1031
      %v1033 = vpop.f32.mrf.mxu0
      %v1034 = vadd.f32 %v880, %v1033
      %1035 = vmatmul.bf16.gmra.mxu0 %v950
      %v1036 = vpop.f32.mrf.mxu0
      %v1037 = vadd.f32 %v880, %v1036
      %v1038 = vpop.f32.mrf.mxu0
      %v1039 = vadd.f32 %v880, %v1038
      %1040 = vdwg.mxu0
      %1041 = vmatpush.bf16.msra.mxu0 0
      %1042 = vmatpush.bf16.msra.mxu0 0
      %1043 = vmatpush.bf16.msra.mxu0 0
      %1044 = vmatpush.bf16.msra.mxu0 0
      %1045 = vmatpush.bf16.msra.mxu0 0
      %1046 = vmatpush.bf16.msra.mxu0 0
      %1047 = vmatpush.bf16.msra.mxu0 %v899
      %1048 = vmatpush.bf16.msra.mxu0 %v897
      %1049 = vmatmul.bf16.gmra.mxu0 %v905
      %v1050 = vpop.f32.mrf.mxu0
      %v1051 = vadd.f32 %v881, %v1050
      %v1052 = vpop.f32.mrf.mxu0
      %v1053 = vadd.f32 %v881, %v1052
      %1054 = vmatmul.bf16.gmra.mxu0 %v908
      %v1055 = vpop.f32.mrf.mxu0
      %v1056 = vadd.f32 %v881, %v1055
      %v1057 = vpop.f32.mrf.mxu0
      %v1058 = vadd.f32 %v881, %v1057
      %1059 = vmatmul.bf16.gmra.mxu0 %v911
      %v1060 = vpop.f32.mrf.mxu0
      %v1061 = vadd.f32 %v881, %v1060
      %v1062 = vpop.f32.mrf.mxu0
      %v1063 = vadd.f32 %v881, %v1062
      %1064 = vmatmul.bf16.gmra.mxu0 %v914
      %v1065 = vpop.f32.mrf.mxu0
      %v1066 = vadd.f32 %v881, %v1065
      %v1067 = vpop.f32.mrf.mxu0
      %v1068 = vadd.f32 %v881, %v1067
      %1069 = vmatmul.bf16.gmra.mxu0 %v917
      %v1070 = vpop.f32.mrf.mxu0
      %v1071 = vadd.f32 %v881, %v1070
      %v1072 = vpop.f32.mrf.mxu0
      %v1073 = vadd.f32 %v881, %v1072
      %1074 = vmatmul.bf16.gmra.mxu0 %v920
      %v1075 = vpop.f32.mrf.mxu0
      %v1076 = vadd.f32 %v881, %v1075
      %v1077 = vpop.f32.mrf.mxu0
      %v1078 = vadd.f32 %v881, %v1077
      %1079 = vmatmul.bf16.gmra.mxu0 %v923
      %v1080 = vpop.f32.mrf.mxu0
      %v1081 = vadd.f32 %v881, %v1080
      %v1082 = vpop.f32.mrf.mxu0
      %v1083 = vadd.f32 %v881, %v1082
      %1084 = vmatmul.bf16.gmra.mxu0 %v926
      %v1085 = vpop.f32.mrf.mxu0
      %v1086 = vadd.f32 %v881, %v1085
      %v1087 = vpop.f32.mrf.mxu0
      %v1088 = vadd.f32 %v881, %v1087
      %1089 = vmatmul.bf16.gmra.mxu0 %v929
      %v1090 = vpop.f32.mrf.mxu0
      %v1091 = vadd.f32 %v881, %v1090
      %v1092 = vpop.f32.mrf.mxu0
      %v1093 = vadd.f32 %v881, %v1092
      %1094 = vmatmul.bf16.gmra.mxu0 %v932
      %v1095 = vpop.f32.mrf.mxu0
      %v1096 = vadd.f32 %v881, %v1095
      %v1097 = vpop.f32.mrf.mxu0
      %v1098 = vadd.f32 %v881, %v1097
      %1099 = vmatmul.bf16.gmra.mxu0 %v935
      %v1100 = vpop.f32.mrf.mxu0
      %v1101 = vadd.f32 %v881, %v1100
      %v1102 = vpop.f32.mrf.mxu0
      %v1103 = vadd.f32 %v881, %v1102
      %1104 = vmatmul.bf16.gmra.mxu0 %v938
      %v1105 = vpop.f32.mrf.mxu0
      %v1106 = vadd.f32 %v881, %v1105
      %v1107 = vpop.f32.mrf.mxu0
      %v1108 = vadd.f32 %v881, %v1107
      %1109 = vmatmul.bf16.gmra.mxu0 %v941
      %v1110 = vpop.f32.mrf.mxu0
      %v1111 = vadd.f32 %v881, %v1110
      %v1112 = vpop.f32.mrf.mxu0
      %v1113 = vadd.f32 %v881, %v1112
      %1114 = vmatmul.bf16.gmra.mxu0 %v944
      %v1115 = vpop.f32.mrf.mxu0
      %v1116 = vadd.f32 %v881, %v1115
      %v1117 = vpop.f32.mrf.mxu0
      %v1118 = vadd.f32 %v881, %v1117
      %1119 = vmatmul.bf16.gmra.mxu0 %v947
      %v1120 = vpop.f32.mrf.mxu0
      %v1121 = vadd.f32 %v881, %v1120
      %v1122 = vpop.f32.mrf.mxu0
      %v1123 = vadd.f32 %v881, %v1122
      %1124 = vmatmul.bf16.gmra.mxu0 %v950
      %v1125 = vpop.f32.mrf.mxu0
      %v1126 = vadd.f32 %v881, %v1125
      %v1127 = vpop.f32.mrf.mxu0
      %v1128 = vadd.f32 %v881, %v1127
      %1129 = vdwg.mxu0
      %1130 = vst [vmem:[%s342] sm:$0xff] %v962
      %1131 = vst [vmem:[%s342 + $0x8] sm:$0xff] %v964
      %1132 = vst [vmem:[%s342 + $0x10] sm:$0xff] %v967
      %1133 = vst [vmem:[%s342 + $0x18] sm:$0xff] %v969
      %1134 = vst [vmem:[%s342 + $0x20] sm:$0xff] %v972
      %1135 = vst [vmem:[%s342 + $0x28] sm:$0xff] %v974
      %1136 = vst [vmem:[%s342 + $0x30] sm:$0xff] %v977
      %1137 = vst [vmem:[%s342 + $0x38] sm:$0xff] %v979
      %1138 = vst [vmem:[%s342 + $0x40] sm:$0xff] %v982
      %1139 = vst [vmem:[%s342 + $0x48] sm:$0xff] %v984
      %1140 = vst [vmem:[%s342 + $0x50] sm:$0xff] %v987
      %1141 = vst [vmem:[%s342 + $0x58] sm:$0xff] %v989
      %1142 = vst [vmem:[%s342 + $0x60] sm:$0xff] %v992
      %1143 = vst [vmem:[%s342 + $0x68] sm:$0xff] %v994
      %1144 = vst [vmem:[%s342 + $0x70] sm:$0xff] %v997
      %1145 = vst [vmem:[%s342 + $0x78] sm:$0xff] %v999
      %1146 = vst [vmem:[%s342 + $0x80] sm:$0xff] %v1002
      %1147 = vst [vmem:[%s342 + $0x88] sm:$0xff] %v1004
      %1148 = vst [vmem:[%s342 + $0x90] sm:$0xff] %v1007
      %1149 = vst [vmem:[%s342 + $0x98] sm:$0xff] %v1009
      %1150 = vst [vmem:[%s342 + $0xa0] sm:$0xff] %v1012
      %1151 = vst [vmem:[%s342 + $0xa8] sm:$0xff] %v1014
      %1152 = vst [vmem:[%s342 + $0xb0] sm:$0xff] %v1017
      %1153 = vst [vmem:[%s342 + $0xb8] sm:$0xff] %v1019
      %1154 = vst [vmem:[%s342 + $0xc0] sm:$0xff] %v1022
      %1155 = vst [vmem:[%s342 + $0xc8] sm:$0xff] %v1024
      %1156 = vst [vmem:[%s342 + $0xd0] sm:$0xff] %v1027
      %1157 = vst [vmem:[%s342 + $0xd8] sm:$0xff] %v1029
      %1158 = vst [vmem:[%s342 + $0xe0] sm:$0xff] %v1032
      %1159 = vst [vmem:[%s342 + $0xe8] sm:$0xff] %v1034
      %1160 = vst [vmem:[%s342 + $0xf0] sm:$0xff] %v1037
      %1161 = vst [vmem:[%s342 + $0xf8] sm:$0xff] %v1039
      %1162 = vmax.xlane.f32.xlu0 %v962
      %v1163 = vpop.xlane.xlu0 %1162
      %1164 = vmax.xlane.f32.xlu0 %v964
      %v1165 = vpop.xlane.xlu0 %1164
      %1166 = vmax.xlane.f32.xlu0 %v967
      %v1167 = vpop.xlane.xlu0 %1166
      %1168 = vmax.xlane.f32.xlu0 %v969
      %v1169 = vpop.xlane.xlu0 %1168
      %1170 = vmax.xlane.f32.xlu0 %v972
      %v1171 = vpop.xlane.xlu0 %1170
      %1172 = vmax.xlane.f32.xlu0 %v974
      %v1173 = vpop.xlane.xlu0 %1172
      %1174 = vmax.xlane.f32.xlu0 %v977
      %v1175 = vpop.xlane.xlu0 %1174
      %1176 = vmax.xlane.f32.xlu0 %v979
      %v1177 = vpop.xlane.xlu0 %1176
      %1178 = vmax.xlane.f32.xlu0 %v982
      %v1179 = vpop.xlane.xlu0 %1178
      %1180 = vmax.xlane.f32.xlu0 %v984
      %v1181 = vpop.xlane.xlu0 %1180
      %1182 = vmax.xlane.f32.xlu0 %v987
      %v1183 = vpop.xlane.xlu0 %1182
      %1184 = vmax.xlane.f32.xlu0 %v989
      %v1185 = vpop.xlane.xlu0 %1184
      %1186 = vmax.xlane.f32.xlu0 %v992
      %v1187 = vpop.xlane.xlu0 %1186
      %1188 = vmax.xlane.f32.xlu0 %v994
      %v1189 = vpop.xlane.xlu0 %1188
      %1190 = vmax.xlane.f32.xlu0 %v997
      %v1191 = vpop.xlane.xlu0 %1190
      %1192 = vmax.xlane.f32.xlu0 %v999
      %v1193 = vpop.xlane.xlu0 %1192
      %1194 = vmax.xlane.f32.xlu0 %v1002
      %v1195 = vpop.xlane.xlu0 %1194
      %1196 = vmax.xlane.f32.xlu0 %v1004
      %v1197 = vpop.xlane.xlu0 %1196
      %1198 = vmax.xlane.f32.xlu0 %v1007
      %v1199 = vpop.xlane.xlu0 %1198
      %1200 = vmax.xlane.f32.xlu0 %v1009
      %v1201 = vpop.xlane.xlu0 %1200
      %1202 = vmax.xlane.f32.xlu0 %v1012
      %v1203 = vpop.xlane.xlu0 %1202
      %1204 = vmax.xlane.f32.xlu0 %v1014
      %v1205 = vpop.xlane.xlu0 %1204
      %1206 = vmax.xlane.f32.xlu0 %v1017
      %v1207 = vpop.xlane.xlu0 %1206
      %1208 = vmax.xlane.f32.xlu0 %v1019
      %v1209 = vpop.xlane.xlu0 %1208
      %1210 = vmax.xlane.f32.xlu0 %v1022
      %v1211 = vpop.xlane.xlu0 %1210
      %1212 = vmax.xlane.f32.xlu0 %v1024
      %v1213 = vpop.xlane.xlu0 %1212
      %1214 = vmax.xlane.f32.xlu0 %v1027
      %v1215 = vpop.xlane.xlu0 %1214
      %1216 = vmax.xlane.f32.xlu0 %v1029
      %v1217 = vpop.xlane.xlu0 %1216
      %1218 = vmax.xlane.f32.xlu0 %v1032
      %v1219 = vpop.xlane.xlu0 %1218
      %1220 = vmax.xlane.f32.xlu0 %v1034
      %v1221 = vpop.xlane.xlu0 %1220
      %1222 = vmax.xlane.f32.xlu0 %v1037
      %v1223 = vpop.xlane.xlu0 %1222
      %1224 = vmax.xlane.f32.xlu0 %v1039
      %v1225 = vpop.xlane.xlu0 %1224
      %v1226 = vlaneseq
      %v1227 = vand.u32 %v1226, 127
      %vm1228 = vcmp.eq.f32.partialorder %v962, %v1163
      %vm1229 = vcmp.eq.f32.partialorder %v964, %v1165
      %vm1230 = vcmp.eq.f32.partialorder %v967, %v1167
      %vm1231 = vcmp.eq.f32.partialorder %v969, %v1169
      %vm1232 = vcmp.eq.f32.partialorder %v972, %v1171
      %vm1233 = vcmp.eq.f32.partialorder %v974, %v1173
      %vm1234 = vcmp.eq.f32.partialorder %v977, %v1175
      %vm1235 = vcmp.eq.f32.partialorder %v979, %v1177
      %vm1236 = vcmp.eq.f32.partialorder %v982, %v1179
      %vm1237 = vcmp.eq.f32.partialorder %v984, %v1181
      %vm1238 = vcmp.eq.f32.partialorder %v987, %v1183
      %vm1239 = vcmp.eq.f32.partialorder %v989, %v1185
      %vm1240 = vcmp.eq.f32.partialorder %v992, %v1187
      %vm1241 = vcmp.eq.f32.partialorder %v994, %v1189
      %vm1242 = vcmp.eq.f32.partialorder %v997, %v1191
      %vm1243 = vcmp.eq.f32.partialorder %v999, %v1193
      %vm1244 = vcmp.eq.f32.partialorder %v1002, %v1195
      %vm1245 = vcmp.eq.f32.partialorder %v1004, %v1197
      %vm1246 = vcmp.eq.f32.partialorder %v1007, %v1199
      %vm1247 = vcmp.eq.f32.partialorder %v1009, %v1201
      %vm1248 = vcmp.eq.f32.partialorder %v1012, %v1203
      %vm1249 = vcmp.eq.f32.partialorder %v1014, %v1205
      %vm1250 = vcmp.eq.f32.partialorder %v1017, %v1207
      %vm1251 = vcmp.eq.f32.partialorder %v1019, %v1209
      %vm1252 = vcmp.eq.f32.partialorder %v1022, %v1211
      %vm1253 = vcmp.eq.f32.partialorder %v1024, %v1213
      %vm1254 = vcmp.eq.f32.partialorder %v1027, %v1215
      %vm1255 = vcmp.eq.f32.partialorder %v1029, %v1217
      %vm1256 = vcmp.eq.f32.partialorder %v1032, %v1219
      %vm1257 = vcmp.eq.f32.partialorder %v1034, %v1221
      %vm1258 = vcmp.eq.f32.partialorder %v1037, %v1223
      %vm1259 = vcmp.eq.f32.partialorder %v1039, %v1225
      %v1260 = vsel %vm1228, %v1227, 128
      %v1261 = vsel %vm1229, %v1227, 128
      %v1262 = vsel %vm1230, %v1227, 128
      %v1263 = vsel %vm1231, %v1227, 128
      %v1264 = vsel %vm1232, %v1227, 128
      %v1265 = vsel %vm1233, %v1227, 128
      %v1266 = vsel %vm1234, %v1227, 128
      %v1267 = vsel %vm1235, %v1227, 128
      %v1268 = vsel %vm1236, %v1227, 128
      %v1269 = vsel %vm1237, %v1227, 128
      %v1270 = vsel %vm1238, %v1227, 128
      %v1271 = vsel %vm1239, %v1227, 128
      %v1272 = vsel %vm1240, %v1227, 128
      %v1273 = vsel %vm1241, %v1227, 128
      %v1274 = vsel %vm1242, %v1227, 128
      %v1275 = vsel %vm1243, %v1227, 128
      %v1276 = vsel %vm1244, %v1227, 128
      %v1277 = vsel %vm1245, %v1227, 128
      %v1278 = vsel %vm1246, %v1227, 128
      %v1279 = vsel %vm1247, %v1227, 128
      %v1280 = vsel %vm1248, %v1227, 128
      %v1281 = vsel %vm1249, %v1227, 128
      %v1282 = vsel %vm1250, %v1227, 128
      %v1283 = vsel %vm1251, %v1227, 128
      %v1284 = vsel %vm1252, %v1227, 128
      %v1285 = vsel %vm1253, %v1227, 128
      %v1286 = vsel %vm1254, %v1227, 128
      %v1287 = vsel %vm1255, %v1227, 128
      %v1288 = vsel %vm1256, %v1227, 128
      %v1289 = vsel %vm1257, %v1227, 128
      %v1290 = vsel %vm1258, %v1227, 128
      %v1291 = vsel %vm1259, %v1227, 128
      %v1292 = vand.u32 %v1260, 65535
      %v1293 = vshra.s32 %v1260, 16
      %v1294 = vcvt.s32.f32 %v1292
      %v1295 = vcvt.s32.f32 %v1293
      %1296 = vmin.xlane.f32.xlu0 %v1295
      %v1297 = vpop.xlane.xlu0 %1296
      %vm1298 = vcmp.eq.f32.partialorder %v1295, %v1297
      %v1299 = vsel %vm1298, %v1294, inf
      %1300 = vmin.xlane.f32.xlu0 %v1299
      %v1301 = vpop.xlane.xlu0 %1300
      %v1302 = vcvt.f32.s32 %v1301
      %v1303 = vcvt.f32.s32 %v1297
      %v1304 = vshll.u32 %v1303, 16
      %v1305 = vadd.s32 %v1304, %v1302
      %v1306 = vand.u32 %v1261, 65535
      %v1307 = vshra.s32 %v1261, 16
      %v1308 = vcvt.s32.f32 %v1306
      %v1309 = vcvt.s32.f32 %v1307
      %1310 = vmin.xlane.f32.xlu0 %v1309
      %v1311 = vpop.xlane.xlu0 %1310
      %vm1312 = vcmp.eq.f32.partialorder %v1309, %v1311
      %v1313 = vsel %vm1312, %v1308, inf
      %1314 = vmin.xlane.f32.xlu0 %v1313
      %v1315 = vpop.xlane.xlu0 %1314
      %v1316 = vcvt.f32.s32 %v1315
      %v1317 = vcvt.f32.s32 %v1311
      %v1318 = vshll.u32 %v1317, 16
      %v1319 = vadd.s32 %v1318, %v1316
      %v1320 = vand.u32 %v1262, 65535
      %v1321 = vshra.s32 %v1262, 16
      %v1322 = vcvt.s32.f32 %v1320
      %v1323 = vcvt.s32.f32 %v1321
      %1324 = vmin.xlane.f32.xlu0 %v1323
      %v1325 = vpop.xlane.xlu0 %1324
      %vm1326 = vcmp.eq.f32.partialorder %v1323, %v1325
      %v1327 = vsel %vm1326, %v1322, inf
      %1328 = vmin.xlane.f32.xlu0 %v1327
      %v1329 = vpop.xlane.xlu0 %1328
      %v1330 = vcvt.f32.s32 %v1329
      %v1331 = vcvt.f32.s32 %v1325
      %v1332 = vshll.u32 %v1331, 16
      %v1333 = vadd.s32 %v1332, %v1330
      %v1334 = vand.u32 %v1263, 65535
      %v1335 = vshra.s32 %v1263, 16
      %v1336 = vcvt.s32.f32 %v1334
      %v1337 = vcvt.s32.f32 %v1335
      %1338 = vmin.xlane.f32.xlu0 %v1337
      %v1339 = vpop.xlane.xlu0 %1338
      %vm1340 = vcmp.eq.f32.partialorder %v1337, %v1339
      %v1341 = vsel %vm1340, %v1336, inf
      %1342 = vmin.xlane.f32.xlu0 %v1341
      %v1343 = vpop.xlane.xlu0 %1342
      %v1344 = vcvt.f32.s32 %v1343
      %v1345 = vcvt.f32.s32 %v1339
      %v1346 = vshll.u32 %v1345, 16
      %v1347 = vadd.s32 %v1346, %v1344
      %v1348 = vand.u32 %v1264, 65535
      %v1349 = vshra.s32 %v1264, 16
      %v1350 = vcvt.s32.f32 %v1348
      %v1351 = vcvt.s32.f32 %v1349
      %1352 = vmin.xlane.f32.xlu0 %v1351
      %v1353 = vpop.xlane.xlu0 %1352
      %vm1354 = vcmp.eq.f32.partialorder %v1351, %v1353
      %v1355 = vsel %vm1354, %v1350, inf
      %1356 = vmin.xlane.f32.xlu0 %v1355
      %v1357 = vpop.xlane.xlu0 %1356
      %v1358 = vcvt.f32.s32 %v1357
      %v1359 = vcvt.f32.s32 %v1353
      %v1360 = vshll.u32 %v1359, 16
      %v1361 = vadd.s32 %v1360, %v1358
      %v1362 = vand.u32 %v1265, 65535
      %v1363 = vshra.s32 %v1265, 16
      %v1364 = vcvt.s32.f32 %v1362
      %v1365 = vcvt.s32.f32 %v1363
      %1366 = vmin.xlane.f32.xlu0 %v1365
      %v1367 = vpop.xlane.xlu0 %1366
      %vm1368 = vcmp.eq.f32.partialorder %v1365, %v1367
      %v1369 = vsel %vm1368, %v1364, inf
      %1370 = vmin.xlane.f32.xlu0 %v1369
      %v1371 = vpop.xlane.xlu0 %1370
      %v1372 = vcvt.f32.s32 %v1371
      %v1373 = vcvt.f32.s32 %v1367
      %v1374 = vshll.u32 %v1373, 16
      %v1375 = vadd.s32 %v1374, %v1372
      %v1376 = vand.u32 %v1266, 65535
      %v1377 = vshra.s32 %v1266, 16
      %v1378 = vcvt.s32.f32 %v1376
      %v1379 = vcvt.s32.f32 %v1377
      %1380 = vmin.xlane.f32.xlu0 %v1379
      %v1381 = vpop.xlane.xlu0 %1380
      %vm1382 = vcmp.eq.f32.partialorder %v1379, %v1381
      %v1383 = vsel %vm1382, %v1378, inf
      %1384 = vmin.xlane.f32.xlu0 %v1383
      %v1385 = vpop.xlane.xlu0 %1384
      %v1386 = vcvt.f32.s32 %v1385
      %v1387 = vcvt.f32.s32 %v1381
      %v1388 = vshll.u32 %v1387, 16
      %v1389 = vadd.s32 %v1388, %v1386
      %v1390 = vand.u32 %v1267, 65535
      %v1391 = vshra.s32 %v1267, 16
      %v1392 = vcvt.s32.f32 %v1390
      %v1393 = vcvt.s32.f32 %v1391
      %1394 = vmin.xlane.f32.xlu0 %v1393
      %v1395 = vpop.xlane.xlu0 %1394
      %vm1396 = vcmp.eq.f32.partialorder %v1393, %v1395
      %v1397 = vsel %vm1396, %v1392, inf
      %1398 = vmin.xlane.f32.xlu0 %v1397
      %v1399 = vpop.xlane.xlu0 %1398
      %v1400 = vcvt.f32.s32 %v1399
      %v1401 = vcvt.f32.s32 %v1395
      %v1402 = vshll.u32 %v1401, 16
      %v1403 = vadd.s32 %v1402, %v1400
      %v1404 = vand.u32 %v1268, 65535
      %v1405 = vshra.s32 %v1268, 16
      %v1406 = vcvt.s32.f32 %v1404
      %v1407 = vcvt.s32.f32 %v1405
      %1408 = vmin.xlane.f32.xlu0 %v1407
      %v1409 = vpop.xlane.xlu0 %1408
      %vm1410 = vcmp.eq.f32.partialorder %v1407, %v1409
      %v1411 = vsel %vm1410, %v1406, inf
      %1412 = vmin.xlane.f32.xlu0 %v1411
      %v1413 = vpop.xlane.xlu0 %1412
      %v1414 = vcvt.f32.s32 %v1413
      %v1415 = vcvt.f32.s32 %v1409
      %v1416 = vshll.u32 %v1415, 16
      %v1417 = vadd.s32 %v1416, %v1414
      %v1418 = vand.u32 %v1269, 65535
      %v1419 = vshra.s32 %v1269, 16
      %v1420 = vcvt.s32.f32 %v1418
      %v1421 = vcvt.s32.f32 %v1419
      %1422 = vmin.xlane.f32.xlu0 %v1421
      %v1423 = vpop.xlane.xlu0 %1422
      %vm1424 = vcmp.eq.f32.partialorder %v1421, %v1423
      %v1425 = vsel %vm1424, %v1420, inf
      %1426 = vmin.xlane.f32.xlu0 %v1425
      %v1427 = vpop.xlane.xlu0 %1426
      %v1428 = vcvt.f32.s32 %v1427
      %v1429 = vcvt.f32.s32 %v1423
      %v1430 = vshll.u32 %v1429, 16
      %v1431 = vadd.s32 %v1430, %v1428
      %v1432 = vand.u32 %v1270, 65535
      %v1433 = vshra.s32 %v1270, 16
      %v1434 = vcvt.s32.f32 %v1432
      %v1435 = vcvt.s32.f32 %v1433
      %1436 = vmin.xlane.f32.xlu0 %v1435
      %v1437 = vpop.xlane.xlu0 %1436
      %vm1438 = vcmp.eq.f32.partialorder %v1435, %v1437
      %v1439 = vsel %vm1438, %v1434, inf
      %1440 = vmin.xlane.f32.xlu0 %v1439
      %v1441 = vpop.xlane.xlu0 %1440
      %v1442 = vcvt.f32.s32 %v1441
      %v1443 = vcvt.f32.s32 %v1437
      %v1444 = vshll.u32 %v1443, 16
      %v1445 = vadd.s32 %v1444, %v1442
      %v1446 = vand.u32 %v1271, 65535
      %v1447 = vshra.s32 %v1271, 16
      %v1448 = vcvt.s32.f32 %v1446
      %v1449 = vcvt.s32.f32 %v1447
      %1450 = vmin.xlane.f32.xlu0 %v1449
      %v1451 = vpop.xlane.xlu0 %1450
      %vm1452 = vcmp.eq.f32.partialorder %v1449, %v1451
      %v1453 = vsel %vm1452, %v1448, inf
      %1454 = vmin.xlane.f32.xlu0 %v1453
      %v1455 = vpop.xlane.xlu0 %1454
      %v1456 = vcvt.f32.s32 %v1455
      %v1457 = vcvt.f32.s32 %v1451
      %v1458 = vshll.u32 %v1457, 16
      %v1459 = vadd.s32 %v1458, %v1456
      %v1460 = vand.u32 %v1272, 65535
      %v1461 = vshra.s32 %v1272, 16
      %v1462 = vcvt.s32.f32 %v1460
      %v1463 = vcvt.s32.f32 %v1461
      %1464 = vmin.xlane.f32.xlu0 %v1463
      %v1465 = vpop.xlane.xlu0 %1464
      %vm1466 = vcmp.eq.f32.partialorder %v1463, %v1465
      %v1467 = vsel %vm1466, %v1462, inf
      %1468 = vmin.xlane.f32.xlu0 %v1467
      %v1469 = vpop.xlane.xlu0 %1468
      %v1470 = vcvt.f32.s32 %v1469
      %v1471 = vcvt.f32.s32 %v1465
      %v1472 = vshll.u32 %v1471, 16
      %v1473 = vadd.s32 %v1472, %v1470
      %v1474 = vand.u32 %v1273, 65535
      %v1475 = vshra.s32 %v1273, 16
      %v1476 = vcvt.s32.f32 %v1474
      %v1477 = vcvt.s32.f32 %v1475
      %1478 = vmin.xlane.f32.xlu0 %v1477
      %v1479 = vpop.xlane.xlu0 %1478
      %vm1480 = vcmp.eq.f32.partialorder %v1477, %v1479
      %v1481 = vsel %vm1480, %v1476, inf
      %1482 = vmin.xlane.f32.xlu0 %v1481
      %v1483 = vpop.xlane.xlu0 %1482
      %v1484 = vcvt.f32.s32 %v1483
      %v1485 = vcvt.f32.s32 %v1479
      %v1486 = vshll.u32 %v1485, 16
      %v1487 = vadd.s32 %v1486, %v1484
      %v1488 = vand.u32 %v1274, 65535
      %v1489 = vshra.s32 %v1274, 16
      %v1490 = vcvt.s32.f32 %v1488
      %v1491 = vcvt.s32.f32 %v1489
      %1492 = vmin.xlane.f32.xlu0 %v1491
      %v1493 = vpop.xlane.xlu0 %1492
      %vm1494 = vcmp.eq.f32.partialorder %v1491, %v1493
      %v1495 = vsel %vm1494, %v1490, inf
      %1496 = vmin.xlane.f32.xlu0 %v1495
      %v1497 = vpop.xlane.xlu0 %1496
      %v1498 = vcvt.f32.s32 %v1497
      %v1499 = vcvt.f32.s32 %v1493
      %v1500 = vshll.u32 %v1499, 16
      %v1501 = vadd.s32 %v1500, %v1498
      %v1502 = vand.u32 %v1275, 65535
      %v1503 = vshra.s32 %v1275, 16
      %v1504 = vcvt.s32.f32 %v1502
      %v1505 = vcvt.s32.f32 %v1503
      %1506 = vmin.xlane.f32.xlu0 %v1505
      %v1507 = vpop.xlane.xlu0 %1506
      %vm1508 = vcmp.eq.f32.partialorder %v1505, %v1507
      %v1509 = vsel %vm1508, %v1504, inf
      %1510 = vmin.xlane.f32.xlu0 %v1509
      %v1511 = vpop.xlane.xlu0 %1510
      %v1512 = vcvt.f32.s32 %v1511
      %v1513 = vcvt.f32.s32 %v1507
      %v1514 = vshll.u32 %v1513, 16
      %v1515 = vadd.s32 %v1514, %v1512
      %v1516 = vand.u32 %v1276, 65535
      %v1517 = vshra.s32 %v1276, 16
      %v1518 = vcvt.s32.f32 %v1516
      %v1519 = vcvt.s32.f32 %v1517
      %1520 = vmin.xlane.f32.xlu0 %v1519
      %v1521 = vpop.xlane.xlu0 %1520
      %vm1522 = vcmp.eq.f32.partialorder %v1519, %v1521
      %v1523 = vsel %vm1522, %v1518, inf
      %1524 = vmin.xlane.f32.xlu0 %v1523
      %v1525 = vpop.xlane.xlu0 %1524
      %v1526 = vcvt.f32.s32 %v1525
      %v1527 = vcvt.f32.s32 %v1521
      %v1528 = vshll.u32 %v1527, 16
      %v1529 = vadd.s32 %v1528, %v1526
      %v1530 = vand.u32 %v1277, 65535
      %v1531 = vshra.s32 %v1277, 16
      %v1532 = vcvt.s32.f32 %v1530
      %v1533 = vcvt.s32.f32 %v1531
      %1534 = vmin.xlane.f32.xlu0 %v1533
      %v1535 = vpop.xlane.xlu0 %1534
      %vm1536 = vcmp.eq.f32.partialorder %v1533, %v1535
      %v1537 = vsel %vm1536, %v1532, inf
      %1538 = vmin.xlane.f32.xlu0 %v1537
      %v1539 = vpop.xlane.xlu0 %1538
      %v1540 = vcvt.f32.s32 %v1539
      %v1541 = vcvt.f32.s32 %v1535
      %v1542 = vshll.u32 %v1541, 16
      %v1543 = vadd.s32 %v1542, %v1540
      %v1544 = vand.u32 %v1278, 65535
      %v1545 = vshra.s32 %v1278, 16
      %v1546 = vcvt.s32.f32 %v1544
      %v1547 = vcvt.s32.f32 %v1545
      %1548 = vmin.xlane.f32.xlu0 %v1547
      %v1549 = vpop.xlane.xlu0 %1548
      %vm1550 = vcmp.eq.f32.partialorder %v1547, %v1549
      %v1551 = vsel %vm1550, %v1546, inf
      %1552 = vmin.xlane.f32.xlu0 %v1551
      %v1553 = vpop.xlane.xlu0 %1552
      %v1554 = vcvt.f32.s32 %v1553
      %v1555 = vcvt.f32.s32 %v1549
      %v1556 = vshll.u32 %v1555, 16
      %v1557 = vadd.s32 %v1556, %v1554
      %v1558 = vand.u32 %v1279, 65535
      %v1559 = vshra.s32 %v1279, 16
      %v1560 = vcvt.s32.f32 %v1558
      %v1561 = vcvt.s32.f32 %v1559
      %1562 = vmin.xlane.f32.xlu0 %v1561
      %v1563 = vpop.xlane.xlu0 %1562
      %vm1564 = vcmp.eq.f32.partialorder %v1561, %v1563
      %v1565 = vsel %vm1564, %v1560, inf
      %1566 = vmin.xlane.f32.xlu0 %v1565
      %v1567 = vpop.xlane.xlu0 %1566
      %v1568 = vcvt.f32.s32 %v1567
      %v1569 = vcvt.f32.s32 %v1563
      %v1570 = vshll.u32 %v1569, 16
      %v1571 = vadd.s32 %v1570, %v1568
      %v1572 = vand.u32 %v1280, 65535
      %v1573 = vshra.s32 %v1280, 16
      %v1574 = vcvt.s32.f32 %v1572
      %v1575 = vcvt.s32.f32 %v1573
      %1576 = vmin.xlane.f32.xlu0 %v1575
      %v1577 = vpop.xlane.xlu0 %1576
      %vm1578 = vcmp.eq.f32.partialorder %v1575, %v1577
      %v1579 = vsel %vm1578, %v1574, inf
      %1580 = vmin.xlane.f32.xlu0 %v1579
      %v1581 = vpop.xlane.xlu0 %1580
      %v1582 = vcvt.f32.s32 %v1581
      %v1583 = vcvt.f32.s32 %v1577
      %v1584 = vshll.u32 %v1583, 16
      %v1585 = vadd.s32 %v1584, %v1582
      %v1586 = vand.u32 %v1281, 65535
      %v1587 = vshra.s32 %v1281, 16
      %v1588 = vcvt.s32.f32 %v1586
      %v1589 = vcvt.s32.f32 %v1587
      %1590 = vmin.xlane.f32.xlu0 %v1589
      %v1591 = vpop.xlane.xlu0 %1590
      %vm1592 = vcmp.eq.f32.partialorder %v1589, %v1591
      %v1593 = vsel %vm1592, %v1588, inf
      %1594 = vmin.xlane.f32.xlu0 %v1593
      %v1595 = vpop.xlane.xlu0 %1594
      %v1596 = vcvt.f32.s32 %v1595
      %v1597 = vcvt.f32.s32 %v1591
      %v1598 = vshll.u32 %v1597, 16
      %v1599 = vadd.s32 %v1598, %v1596
      %v1600 = vand.u32 %v1282, 65535
      %v1601 = vshra.s32 %v1282, 16
      %v1602 = vcvt.s32.f32 %v1600
      %v1603 = vcvt.s32.f32 %v1601
      %1604 = vmin.xlane.f32.xlu0 %v1603
      %v1605 = vpop.xlane.xlu0 %1604
      %vm1606 = vcmp.eq.f32.partialorder %v1603, %v1605
      %v1607 = vsel %vm1606, %v1602, inf
      %1608 = vmin.xlane.f32.xlu0 %v1607
      %v1609 = vpop.xlane.xlu0 %1608
      %v1610 = vcvt.f32.s32 %v1609
      %v1611 = vcvt.f32.s32 %v1605
      %v1612 = vshll.u32 %v1611, 16
      %v1613 = vadd.s32 %v1612, %v1610
      %v1614 = vand.u32 %v1283, 65535
      %v1615 = vshra.s32 %v1283, 16
      %v1616 = vcvt.s32.f32 %v1614
      %v1617 = vcvt.s32.f32 %v1615
      %1618 = vmin.xlane.f32.xlu0 %v1617
      %v1619 = vpop.xlane.xlu0 %1618
      %vm1620 = vcmp.eq.f32.partialorder %v1617, %v1619
      %v1621 = vsel %vm1620, %v1616, inf
      %1622 = vmin.xlane.f32.xlu0 %v1621
      %v1623 = vpop.xlane.xlu0 %1622
      %v1624 = vcvt.f32.s32 %v1623
      %v1625 = vcvt.f32.s32 %v1619
      %v1626 = vshll.u32 %v1625, 16
      %v1627 = vadd.s32 %v1626, %v1624
      %v1628 = vand.u32 %v1284, 65535
      %v1629 = vshra.s32 %v1284, 16
      %v1630 = vcvt.s32.f32 %v1628
      %v1631 = vcvt.s32.f32 %v1629
      %1632 = vmin.xlane.f32.xlu0 %v1631
      %v1633 = vpop.xlane.xlu0 %1632
      %vm1634 = vcmp.eq.f32.partialorder %v1631, %v1633
      %v1635 = vsel %vm1634, %v1630, inf
      %1636 = vmin.xlane.f32.xlu0 %v1635
      %v1637 = vpop.xlane.xlu0 %1636
      %v1638 = vcvt.f32.s32 %v1637
      %v1639 = vcvt.f32.s32 %v1633
      %v1640 = vshll.u32 %v1639, 16
      %v1641 = vadd.s32 %v1640, %v1638
      %v1642 = vand.u32 %v1285, 65535
      %v1643 = vshra.s32 %v1285, 16
      %v1644 = vcvt.s32.f32 %v1642
      %v1645 = vcvt.s32.f32 %v1643
      %1646 = vmin.xlane.f32.xlu0 %v1645
      %v1647 = vpop.xlane.xlu0 %1646
      %vm1648 = vcmp.eq.f32.partialorder %v1645, %v1647
      %v1649 = vsel %vm1648, %v1644, inf
      %1650 = vmin.xlane.f32.xlu0 %v1649
      %v1651 = vpop.xlane.xlu0 %1650
      %v1652 = vcvt.f32.s32 %v1651
      %v1653 = vcvt.f32.s32 %v1647
      %v1654 = vshll.u32 %v1653, 16
      %v1655 = vadd.s32 %v1654, %v1652
      %v1656 = vand.u32 %v1286, 65535
      %v1657 = vshra.s32 %v1286, 16
      %v1658 = vcvt.s32.f32 %v1656
      %v1659 = vcvt.s32.f32 %v1657
      %1660 = vmin.xlane.f32.xlu0 %v1659
      %v1661 = vpop.xlane.xlu0 %1660
      %vm1662 = vcmp.eq.f32.partialorder %v1659, %v1661
      %v1663 = vsel %vm1662, %v1658, inf
      %1664 = vmin.xlane.f32.xlu0 %v1663
      %v1665 = vpop.xlane.xlu0 %1664
      %v1666 = vcvt.f32.s32 %v1665
      %v1667 = vcvt.f32.s32 %v1661
      %v1668 = vshll.u32 %v1667, 16
      %v1669 = vadd.s32 %v1668, %v1666
      %v1670 = vand.u32 %v1287, 65535
      %v1671 = vshra.s32 %v1287, 16
      %v1672 = vcvt.s32.f32 %v1670
      %v1673 = vcvt.s32.f32 %v1671
      %1674 = vmin.xlane.f32.xlu0 %v1673
      %v1675 = vpop.xlane.xlu0 %1674
      %vm1676 = vcmp.eq.f32.partialorder %v1673, %v1675
      %v1677 = vsel %vm1676, %v1672, inf
      %1678 = vmin.xlane.f32.xlu0 %v1677
      %v1679 = vpop.xlane.xlu0 %1678
      %v1680 = vcvt.f32.s32 %v1679
      %v1681 = vcvt.f32.s32 %v1675
      %v1682 = vshll.u32 %v1681, 16
      %v1683 = vadd.s32 %v1682, %v1680
      %v1684 = vand.u32 %v1288, 65535
      %v1685 = vshra.s32 %v1288, 16
      %v1686 = vcvt.s32.f32 %v1684
      %v1687 = vcvt.s32.f32 %v1685
      %1688 = vmin.xlane.f32.xlu0 %v1687
      %v1689 = vpop.xlane.xlu0 %1688
      %vm1690 = vcmp.eq.f32.partialorder %v1687, %v1689
      %v1691 = vsel %vm1690, %v1686, inf
      %1692 = vmin.xlane.f32.xlu0 %v1691
      %v1693 = vpop.xlane.xlu0 %1692
      %v1694 = vcvt.f32.s32 %v1693
      %v1695 = vcvt.f32.s32 %v1689
      %v1696 = vshll.u32 %v1695, 16
      %v1697 = vadd.s32 %v1696, %v1694
      %v1698 = vand.u32 %v1289, 65535
      %v1699 = vshra.s32 %v1289, 16
      %v1700 = vcvt.s32.f32 %v1698
      %v1701 = vcvt.s32.f32 %v1699
      %1702 = vmin.xlane.f32.xlu0 %v1701
      %v1703 = vpop.xlane.xlu0 %1702
      %vm1704 = vcmp.eq.f32.partialorder %v1701, %v1703
      %v1705 = vsel %vm1704, %v1700, inf
      %1706 = vmin.xlane.f32.xlu0 %v1705
      %v1707 = vpop.xlane.xlu0 %1706
      %v1708 = vcvt.f32.s32 %v1707
      %v1709 = vcvt.f32.s32 %v1703
      %v1710 = vshll.u32 %v1709, 16
      %v1711 = vadd.s32 %v1710, %v1708
      %v1712 = vand.u32 %v1290, 65535
      %v1713 = vshra.s32 %v1290, 16
      %v1714 = vcvt.s32.f32 %v1712
      %v1715 = vcvt.s32.f32 %v1713
      %1716 = vmin.xlane.f32.xlu0 %v1715
      %v1717 = vpop.xlane.xlu0 %1716
      %vm1718 = vcmp.eq.f32.partialorder %v1715, %v1717
      %v1719 = vsel %vm1718, %v1714, inf
      %1720 = vmin.xlane.f32.xlu0 %v1719
      %v1721 = vpop.xlane.xlu0 %1720
      %v1722 = vcvt.f32.s32 %v1721
      %v1723 = vcvt.f32.s32 %v1717
      %v1724 = vshll.u32 %v1723, 16
      %v1725 = vadd.s32 %v1724, %v1722
      %v1726 = vand.u32 %v1291, 65535
      %v1727 = vshra.s32 %v1291, 16
      %v1728 = vcvt.s32.f32 %v1726
      %v1729 = vcvt.s32.f32 %v1727
      %1730 = vmin.xlane.f32.xlu0 %v1729
      %v1731 = vpop.xlane.xlu0 %1730
      %vm1732 = vcmp.eq.f32.partialorder %v1729, %v1731
      %v1733 = vsel %vm1732, %v1728, inf
      %1734 = vmin.xlane.f32.xlu0 %v1733
      %v1735 = vpop.xlane.xlu0 %1734
      %v1736 = vcvt.f32.s32 %v1735
      %v1737 = vcvt.f32.s32 %v1731
      %v1738 = vshll.u32 %v1737, 16
      %v1739 = vadd.s32 %v1738, %v1736
      %vm1740 = vcmp.eq.s32.totalorder %v1227, %v1305
      %vm1741 = vcmp.eq.s32.totalorder %v1227, %v1319
      %vm1742 = vcmp.eq.s32.totalorder %v1227, %v1333
      %vm1743 = vcmp.eq.s32.totalorder %v1227, %v1347
      %vm1744 = vcmp.eq.s32.totalorder %v1227, %v1361
      %vm1745 = vcmp.eq.s32.totalorder %v1227, %v1375
      %vm1746 = vcmp.eq.s32.totalorder %v1227, %v1389
      %vm1747 = vcmp.eq.s32.totalorder %v1227, %v1403
      %vm1748 = vcmp.eq.s32.totalorder %v1227, %v1417
      %vm1749 = vcmp.eq.s32.totalorder %v1227, %v1431
      %vm1750 = vcmp.eq.s32.totalorder %v1227, %v1445
      %vm1751 = vcmp.eq.s32.totalorder %v1227, %v1459
      %vm1752 = vcmp.eq.s32.totalorder %v1227, %v1473
      %vm1753 = vcmp.eq.s32.totalorder %v1227, %v1487
      %vm1754 = vcmp.eq.s32.totalorder %v1227, %v1501
      %vm1755 = vcmp.eq.s32.totalorder %v1227, %v1515
      %vm1756 = vcmp.eq.s32.totalorder %v1227, %v1529
      %vm1757 = vcmp.eq.s32.totalorder %v1227, %v1543
      %vm1758 = vcmp.eq.s32.totalorder %v1227, %v1557
      %vm1759 = vcmp.eq.s32.totalorder %v1227, %v1571
      %vm1760 = vcmp.eq.s32.totalorder %v1227, %v1585
      %vm1761 = vcmp.eq.s32.totalorder %v1227, %v1599
      %vm1762 = vcmp.eq.s32.totalorder %v1227, %v1613
      %vm1763 = vcmp.eq.s32.totalorder %v1227, %v1627
      %vm1764 = vcmp.eq.s32.totalorder %v1227, %v1641
      %vm1765 = vcmp.eq.s32.totalorder %v1227, %v1655
      %vm1766 = vcmp.eq.s32.totalorder %v1227, %v1669
      %vm1767 = vcmp.eq.s32.totalorder %v1227, %v1683
      %vm1768 = vcmp.eq.s32.totalorder %v1227, %v1697
      %vm1769 = vcmp.eq.s32.totalorder %v1227, %v1711
      %vm1770 = vcmp.eq.s32.totalorder %v1227, %v1725
      %vm1771 = vcmp.eq.s32.totalorder %v1227, %v1739
      %v1772 = vsel %vm1740, 1, 0
      %v1773 = vsel %vm1741, 1, 0
      %v1774 = vsel %vm1742, 1, 0
      %v1775 = vsel %vm1743, 1, 0
      %v1776 = vsel %vm1744, 1, 0
      %v1777 = vsel %vm1745, 1, 0
      %v1778 = vsel %vm1746, 1, 0
      %v1779 = vsel %vm1747, 1, 0
      %v1780 = vsel %vm1748, 1, 0
      %v1781 = vsel %vm1749, 1, 0
      %v1782 = vsel %vm1750, 1, 0
      %v1783 = vsel %vm1751, 1, 0
      %v1784 = vsel %vm1752, 1, 0
      %v1785 = vsel %vm1753, 1, 0
      %v1786 = vsel %vm1754, 1, 0
      %v1787 = vsel %vm1755, 1, 0
      %v1788 = vsel %vm1756, 1, 0
      %v1789 = vsel %vm1757, 1, 0
      %v1790 = vsel %vm1758, 1, 0
      %v1791 = vsel %vm1759, 1, 0
      %v1792 = vsel %vm1760, 1, 0
      %v1793 = vsel %vm1761, 1, 0
      %v1794 = vsel %vm1762, 1, 0
      %v1795 = vsel %vm1763, 1, 0
      %v1796 = vsel %vm1764, 1, 0
      %v1797 = vsel %vm1765, 1, 0
      %v1798 = vsel %vm1766, 1, 0
      %v1799 = vsel %vm1767, 1, 0
      %v1800 = vsel %vm1768, 1, 0
      %v1801 = vsel %vm1769, 1, 0
      %v1802 = vsel %vm1770, 1, 0
      %v1803 = vsel %vm1771, 1, 0
      %v1804 = vcvt.s32.f32 %v1772
      %v1805 = vcvt.s32.f32 %v1773
      %v1806 = vcvt.s32.f32 %v1774
      %v1807 = vcvt.s32.f32 %v1775
      %v1808 = vcvt.s32.f32 %v1776
      %v1809 = vcvt.s32.f32 %v1777
      %v1810 = vcvt.s32.f32 %v1778
      %v1811 = vcvt.s32.f32 %v1779
      %v1812 = vcvt.s32.f32 %v1780
      %v1813 = vcvt.s32.f32 %v1781
      %v1814 = vcvt.s32.f32 %v1782
      %v1815 = vcvt.s32.f32 %v1783
      %v1816 = vcvt.s32.f32 %v1784
      %v1817 = vcvt.s32.f32 %v1785
      %v1818 = vcvt.s32.f32 %v1786
      %v1819 = vcvt.s32.f32 %v1787
      %v1820 = vcvt.s32.f32 %v1788
      %v1821 = vcvt.s32.f32 %v1789
      %v1822 = vcvt.s32.f32 %v1790
      %v1823 = vcvt.s32.f32 %v1791
      %v1824 = vcvt.s32.f32 %v1792
      %v1825 = vcvt.s32.f32 %v1793
      %v1826 = vcvt.s32.f32 %v1794
      %v1827 = vcvt.s32.f32 %v1795
      %v1828 = vcvt.s32.f32 %v1796
      %v1829 = vcvt.s32.f32 %v1797
      %v1830 = vcvt.s32.f32 %v1798
      %v1831 = vcvt.s32.f32 %v1799
      %v1832 = vcvt.s32.f32 %v1800
      %v1833 = vcvt.s32.f32 %v1801
      %v1834 = vcvt.s32.f32 %v1802
      %v1835 = vcvt.s32.f32 %v1803
      %v1836 = vpack.c.bf16 %v1805, %v1804
      %v1837 = vpack.c.bf16 %v1807, %v1806
      %v1838 = vpack.c.bf16 %v1809, %v1808
      %v1839 = vpack.c.bf16 %v1811, %v1810
      %v1840 = vpack.c.bf16 %v1813, %v1812
      %v1841 = vpack.c.bf16 %v1815, %v1814
      %v1842 = vpack.c.bf16 %v1817, %v1816
      %v1843 = vpack.c.bf16 %v1819, %v1818
      %v1844 = vpack.c.bf16 %v1821, %v1820
      %v1845 = vpack.c.bf16 %v1823, %v1822
      %v1846 = vpack.c.bf16 %v1825, %v1824
      %v1847 = vpack.c.bf16 %v1827, %v1826
      %v1848 = vpack.c.bf16 %v1829, %v1828
      %v1849 = vpack.c.bf16 %v1831, %v1830
      %v1850 = vpack.c.bf16 %v1833, %v1832
      %v1851 = vpack.c.bf16 %v1835, %v1834
      %v1852 = vld [vmem:[%s7] sm:$0xf]
      %v1853 = vld [vmem:[%s7 + $0x4] sm:$0xf]
      %v1854 = vld [vmem:[%s7 + $0x8] sm:$0xf]
      %v1855 = vld [vmem:[%s7 + $0xc] sm:$0xf]
      %v1856 = vld [vmem:[%s7 + $0x10] sm:$0xf]
      %v1857 = vld [vmem:[%s7 + $0x14] sm:$0xf]
      %v1858 = vld [vmem:[%s7 + $0x18] sm:$0xf]
      %v1859 = vld [vmem:[%s7 + $0x1c] sm:$0xf]
      %v1860 = vld [vmem:[%s7 + $0x20] sm:$0xf]
      %v1861 = vld [vmem:[%s7 + $0x24] sm:$0xf]
      %v1862 = vld [vmem:[%s7 + $0x28] sm:$0xf]
      %v1863 = vld [vmem:[%s7 + $0x2c] sm:$0xf]
      %v1864 = vld [vmem:[%s7 + $0x30] sm:$0xf]
      %v1865 = vld [vmem:[%s7 + $0x34] sm:$0xf]
      %v1866 = vld [vmem:[%s7 + $0x38] sm:$0xf]
      %v1867 = vld [vmem:[%s7 + $0x3c] sm:$0xf]
      %v1884 = vunpack.c.l.b16 %v1852
      %v1885 = vunpack.c.l.b16 %v1853
      %v1886 = vunpack.c.l.b16 %v1854
      %v1887 = vunpack.c.l.b16 %v1855
      %v1888 = vunpack.c.l.b16 %v1856
      %v1889 = vunpack.c.l.b16 %v1857
      %v1890 = vunpack.c.l.b16 %v1858
      %v1891 = vunpack.c.l.b16 %v1859
      %v1892 = vunpack.c.l.b16 %v1860
      %v1893 = vunpack.c.l.b16 %v1861
      %v1894 = vunpack.c.l.b16 %v1862
      %v1895 = vunpack.c.l.b16 %v1863
      %v1896 = vunpack.c.l.b16 %v1864
      %v1897 = vunpack.c.l.b16 %v1865
      %v1898 = vunpack.c.l.b16 %v1866
      %v1899 = vunpack.c.l.b16 %v1867
      %v1900 = vpack.c.b16 %v1885, %v1884
      %v1901 = vpack.c.b16 %v1887, %v1886
      %v1902 = vpack.c.b16 %v1889, %v1888
      %v1903 = vpack.c.b16 %v1891, %v1890
      %v1904 = vpack.c.b16 %v1893, %v1892
      %v1905 = vpack.c.b16 %v1895, %v1894
      %v1906 = vpack.c.b16 %v1897, %v1896
      %v1907 = vpack.c.b16 %v1899, %v1898
      %1916 = vmatpush.bf16.msra.mxu0 %v1907
      %1917 = vmatpush.bf16.msra.mxu0 %v1906
      %1918 = vmatpush.bf16.msra.mxu0 %v1905
      %1919 = vmatpush.bf16.msra.mxu0 %v1904
      %1920 = vmatpush.bf16.msra.mxu0 %v1903
      %1921 = vmatpush.bf16.msra.mxu0 %v1902
      %1922 = vmatpush.bf16.msra.mxu0 %v1901
      %1923 = vmatpush.bf16.msra.mxu0 %v1900
      %1924 = vmatmul.bf16.gmra.mxu0 %v1836
      %v1925 = vpop.f32.mrf.mxu0
      %v1926 = vadd.f32 0.0, %v1925
      %v1927 = vpop.f32.mrf.mxu0
      %v1928 = vadd.f32 0.0, %v1927
      %1929 = vmatmul.bf16.gmra.mxu0 %v1837
      %v1930 = vpop.f32.mrf.mxu0
      %v1931 = vadd.f32 0.0, %v1930
      %v1932 = vpop.f32.mrf.mxu0
      %v1933 = vadd.f32 0.0, %v1932
      %1934 = vmatmul.bf16.gmra.mxu0 %v1838
      %v1935 = vpop.f32.mrf.mxu0
      %v1936 = vadd.f32 0.0, %v1935
      %v1937 = vpop.f32.mrf.mxu0
      %v1938 = vadd.f32 0.0, %v1937
      %1939 = vmatmul.bf16.gmra.mxu0 %v1839
      %v1940 = vpop.f32.mrf.mxu0
      %v1941 = vadd.f32 0.0, %v1940
      %v1942 = vpop.f32.mrf.mxu0
      %v1943 = vadd.f32 0.0, %v1942
      %1944 = vmatmul.bf16.gmra.mxu0 %v1840
      %v1945 = vpop.f32.mrf.mxu0
      %v1946 = vadd.f32 0.0, %v1945
      %v1947 = vpop.f32.mrf.mxu0
      %v1948 = vadd.f32 0.0, %v1947
      %1949 = vmatmul.bf16.gmra.mxu0 %v1841
      %v1950 = vpop.f32.mrf.mxu0
      %v1951 = vadd.f32 0.0, %v1950
      %v1952 = vpop.f32.mrf.mxu0
      %v1953 = vadd.f32 0.0, %v1952
      %1954 = vmatmul.bf16.gmra.mxu0 %v1842
      %v1955 = vpop.f32.mrf.mxu0
      %v1956 = vadd.f32 0.0, %v1955
      %v1957 = vpop.f32.mrf.mxu0
      %v1958 = vadd.f32 0.0, %v1957
      %1959 = vmatmul.bf16.gmra.mxu0 %v1843
      %v1960 = vpop.f32.mrf.mxu0
      %v1961 = vadd.f32 0.0, %v1960
      %v1962 = vpop.f32.mrf.mxu0
      %v1963 = vadd.f32 0.0, %v1962
      %1964 = vmatmul.bf16.gmra.mxu0 %v1844
      %v1965 = vpop.f32.mrf.mxu0
      %v1966 = vadd.f32 0.0, %v1965
      %v1967 = vpop.f32.mrf.mxu0
      %v1968 = vadd.f32 0.0, %v1967
      %1969 = vmatmul.bf16.gmra.mxu0 %v1845
      %v1970 = vpop.f32.mrf.mxu0
      %v1971 = vadd.f32 0.0, %v1970
      %v1972 = vpop.f32.mrf.mxu0
      %v1973 = vadd.f32 0.0, %v1972
      %1974 = vmatmul.bf16.gmra.mxu0 %v1846
      %v1975 = vpop.f32.mrf.mxu0
      %v1976 = vadd.f32 0.0, %v1975
      %v1977 = vpop.f32.mrf.mxu0
      %v1978 = vadd.f32 0.0, %v1977
      %1979 = vmatmul.bf16.gmra.mxu0 %v1847
      %v1980 = vpop.f32.mrf.mxu0
      %v1981 = vadd.f32 0.0, %v1980
      %v1982 = vpop.f32.mrf.mxu0
      %v1983 = vadd.f32 0.0, %v1982
      %1984 = vmatmul.bf16.gmra.mxu0 %v1848
      %v1985 = vpop.f32.mrf.mxu0
      %v1986 = vadd.f32 0.0, %v1985
      %v1987 = vpop.f32.mrf.mxu0
      %v1988 = vadd.f32 0.0, %v1987
      %1989 = vmatmul.bf16.gmra.mxu0 %v1849
      %v1990 = vpop.f32.mrf.mxu0
      %v1991 = vadd.f32 0.0, %v1990
      %v1992 = vpop.f32.mrf.mxu0
      %v1993 = vadd.f32 0.0, %v1992
      %1994 = vmatmul.bf16.gmra.mxu0 %v1850
      %v1995 = vpop.f32.mrf.mxu0
      %v1996 = vadd.f32 0.0, %v1995
      %v1997 = vpop.f32.mrf.mxu0
      %v1998 = vadd.f32 0.0, %v1997
      %1999 = vmatmul.bf16.gmra.mxu0 %v1851
      %v2000 = vpop.f32.mrf.mxu0
      %v2001 = vadd.f32 0.0, %v2000
      %v2002 = vpop.f32.mrf.mxu0
      %v2003 = vadd.f32 0.0, %v2002
      %2004 = vdwg.mxu0
      %v2005 = vadd.f32 %v1051, %v1926
      %v2006 = vadd.f32 %v1053, %v1928
      %v2007 = vadd.f32 %v1056, %v1931
      %v2008 = vadd.f32 %v1058, %v1933
      %v2009 = vadd.f32 %v1061, %v1936
      %v2010 = vadd.f32 %v1063, %v1938
      %v2011 = vadd.f32 %v1066, %v1941
      %v2012 = vadd.f32 %v1068, %v1943
      %v2013 = vadd.f32 %v1071, %v1946
      %v2014 = vadd.f32 %v1073, %v1948
      %v2015 = vadd.f32 %v1076, %v1951
      %v2016 = vadd.f32 %v1078, %v1953
      %v2017 = vadd.f32 %v1081, %v1956
      %v2018 = vadd.f32 %v1083, %v1958
      %v2019 = vadd.f32 %v1086, %v1961
      %v2020 = vadd.f32 %v1088, %v1963
      %v2021 = vadd.f32 %v1091, %v1966
      %v2022 = vadd.f32 %v1093, %v1968
      %v2023 = vadd.f32 %v1096, %v1971
      %v2024 = vadd.f32 %v1098, %v1973
      %v2025 = vadd.f32 %v1101, %v1976
      %v2026 = vadd.f32 %v1103, %v1978
      %v2027 = vadd.f32 %v1106, %v1981
      %v2028 = vadd.f32 %v1108, %v1983
      %v2029 = vadd.f32 %v1111, %v1986
      %v2030 = vadd.f32 %v1113, %v1988
      %v2031 = vadd.f32 %v1116, %v1991
      %v2032 = vadd.f32 %v1118, %v1993
      %v2033 = vadd.f32 %v1121, %v1996
      %v2034 = vadd.f32 %v1123, %v1998
      %v2035 = vadd.f32 %v1126, %v2001
      %v2036 = vadd.f32 %v1128, %v2003
      %v2037 = vtanh.pop %v2005
      %v2038 = vtanh.pop %v2006
      %v2039 = vtanh.pop %v2007
      %v2040 = vtanh.pop %v2008
      %v2041 = vtanh.pop %v2009
      %v2042 = vtanh.pop %v2010
      %v2043 = vtanh.pop %v2011
      %v2044 = vtanh.pop %v2012
      %v2045 = vtanh.pop %v2013
      %v2046 = vtanh.pop %v2014
      %v2047 = vtanh.pop %v2015
      %v2048 = vtanh.pop %v2016
      %v2049 = vtanh.pop %v2017
      %v2050 = vtanh.pop %v2018
      %v2051 = vtanh.pop %v2019
      %v2052 = vtanh.pop %v2020
      %v2053 = vtanh.pop %v2021
      %v2054 = vtanh.pop %v2022
      %v2055 = vtanh.pop %v2023
      %v2056 = vtanh.pop %v2024
      %v2057 = vtanh.pop %v2025
      %v2058 = vtanh.pop %v2026
      %v2059 = vtanh.pop %v2027
      %v2060 = vtanh.pop %v2028
      %v2061 = vtanh.pop %v2029
      %v2062 = vtanh.pop %v2030
      %v2063 = vtanh.pop %v2031
      %v2064 = vtanh.pop %v2032
      %v2065 = vtanh.pop %v2033
      %v2066 = vtanh.pop %v2034
      %v2067 = vtanh.pop %v2035
      %v2068 = vtanh.pop %v2036
      %2069 = vst [vmem:[%s348] sm:$0xff] %v2037
      %2070 = vst [vmem:[%s348 + $0x8] sm:$0xff] %v2038
      %2071 = vst [vmem:[%s348 + $0x10] sm:$0xff] %v2039
      %2072 = vst [vmem:[%s348 + $0x18] sm:$0xff] %v2040
      %2073 = vst [vmem:[%s348 + $0x20] sm:$0xff] %v2041
      %2074 = vst [vmem:[%s348 + $0x28] sm:$0xff] %v2042
      %2075 = vst [vmem:[%s348 + $0x30] sm:$0xff] %v2043
      %2076 = vst [vmem:[%s348 + $0x38] sm:$0xff] %v2044
      %2077 = vst [vmem:[%s348 + $0x40] sm:$0xff] %v2045
      %2078 = vst [vmem:[%s348 + $0x48] sm:$0xff] %v2046
      %2079 = vst [vmem:[%s348 + $0x50] sm:$0xff] %v2047
      %2080 = vst [vmem:[%s348 + $0x58] sm:$0xff] %v2048
      %2081 = vst [vmem:[%s348 + $0x60] sm:$0xff] %v2049
      %2082 = vst [vmem:[%s348 + $0x68] sm:$0xff] %v2050
      %2083 = vst [vmem:[%s348 + $0x70] sm:$0xff] %v2051
      %2084 = vst [vmem:[%s348 + $0x78] sm:$0xff] %v2052
      %2085 = vst [vmem:[%s348 + $0x80] sm:$0xff] %v2053
      %2086 = vst [vmem:[%s348 + $0x88] sm:$0xff] %v2054
      %2087 = vst [vmem:[%s348 + $0x90] sm:$0xff] %v2055
      %2088 = vst [vmem:[%s348 + $0x98] sm:$0xff] %v2056
      %2089 = vst [vmem:[%s348 + $0xa0] sm:$0xff] %v2057
      %2090 = vst [vmem:[%s348 + $0xa8] sm:$0xff] %v2058
      %2091 = vst [vmem:[%s348 + $0xb0] sm:$0xff] %v2059
      %2092 = vst [vmem:[%s348 + $0xb8] sm:$0xff] %v2060
      %2093 = vst [vmem:[%s348 + $0xc0] sm:$0xff] %v2061
      %2094 = vst [vmem:[%s348 + $0xc8] sm:$0xff] %v2062
      %2095 = vst [vmem:[%s348 + $0xd0] sm:$0xff] %v2063
      %2096 = vst [vmem:[%s348 + $0xd8] sm:$0xff] %v2064
      %2097 = vst [vmem:[%s348 + $0xe0] sm:$0xff] %v2065
      %2098 = vst [vmem:[%s348 + $0xe8] sm:$0xff] %v2066
      %2099 = vst [vmem:[%s348 + $0xf0] sm:$0xff] %v2067
      %2100 = vst [vmem:[%s348 + $0xf8] sm:$0xff] %v2068
      %s2101 = smul.u32 32, %s21
      %p2102 = scmp.lt.s32.totalorder %s2101, 63
      %s2103 = scalar_select %p2102, %s2101, 63
      %s2104 = smul.addr %s2103, 8
      %s2105 = scalar_lea.vmem %s8, %s2104
      %s2106 = smul.u32 32, %s21
      %p2107 = scmp.lt.s32.totalorder %s2106, 63
      %s2108 = scalar_select %p2107, %s2106, 63
      %s2109 = smul.addr %s2108, 8
      %s2110 = scalar_lea.vmem %s9, %s2109
      // Predicated region
      $region53: #{actor_forward.1} parent=51 // pred_check
        %p2111 = pneg %p212
      $region54: #{actor_forward.1} parent=51 // pred_check_branch
        %2113 = sbr.rel (%p2111) target = $region56
      $region55: #{actor_forward.1} parent=51 // pred_region
        %s2114 = smul.u32 32, %s21
      $region56: #{actor_forward.1} parent=51 // pred_fallthru
        _
      // Predicated region
      $region57: #{actor_forward.1} parent=51 // pred_check
        %p2115 = pneg %p238
      $region58: #{actor_forward.1} parent=51 // pred_check_branch
        %2117 = sbr.rel (%p2115) target = $region60
      $region59: #{actor_forward.1} parent=51 // pred_region
        %s2118 = smul.u32 32, %s21
      $region60: #{actor_forward.1} parent=51 // pred_fallthru
        _
    $region52: #{actor_forward.1} parent=5 // pred_fallthru
      _
    %p2119 = scmp.le.s32.totalorder 2, %s16
    // Predicated region
    $region61: #{actor_forward.1} parent=5 // pred_check
      %p2120 = pneg %p2119
    $region62: #{actor_forward.1} parent=5 // pred_check_branch
      %2122 = sbr.rel (%p2120) target = $region64
    $region63: #{actor_forward.1} parent=5 // pred_region
      %s2123 = ssub.s32 %s16, 2
      // Predicated region
      $region65: #{actor_forward.1} parent=63 // pred_check
        %p2124 = pneg %p218
      $region66: #{actor_forward.1} parent=63 // pred_check_branch
        %2126 = sbr.rel (%p2124) target = $region68
      $region67: #{actor_forward.1} parent=63 // pred_region
        %s2127 = smul.u32 32, %s22
        %p2128 = scmp.lt.s32.totalorder %s2127, 63
        %s2129 = scalar_select %p2128, %s2127, 63
        %s2130 = smul.addr %s2129, 8
        %s2131 = scalar_lea.vmem %s8, %s2130
      $region68: #{actor_forward.1} parent=63 // pred_fallthru
        _
      // Predicated region
      $region69: #{actor_forward.1} parent=63 // pred_check
        %p2132 = pneg %p244
      $region70: #{actor_forward.1} parent=63 // pred_check_branch
        %2134 = sbr.rel (%p2132) target = $region72
      $region71: #{actor_forward.1} parent=63 // pred_region
        %s2135 = smul.u32 32, %s22
        %p2136 = scmp.lt.s32.totalorder %s2135, 63
        %s2137 = scalar_select %p2136, %s2135, 63
        %s2138 = smul.addr %s2137, 8
        %s2139 = scalar_lea.vmem %s9, %s2138
      $region72: #{actor_forward.1} parent=63 // pred_fallthru
        _
    $region64: #{actor_forward.1} parent=5 // pred_fallthru
      _
  $region6: #{actor_forward.1} parent=0 // loop_footer
    %s20 = sadd.s32 1, %s16
  $region7: #{actor_forward.1} parent=0 // loop_footer_branch
    %15 = sbr.rel target = $region3
  $region8: #{actor_forward.1} parent=0 // loop_exit
    _

</llo_original>
